<compile_context>
chip_gen: v7x
topology: tpu7x:2x2x1
jax: 0.10.0
libtpu: 0.0.40
codegen_flags: <defaults>
</compile_context>

<pallas_src>
import jax
import jax.numpy as jnp
from jax.experimental import pallas as pl
from jax.experimental.pallas import tpu as pltpu

H1, H2, H3 = 1024, 512, 256


# ----------------------------- Pallas kernel ------------------------------ #
def disc_kernel(x_ref, w1_ref, b1_ref, w2_ref, b2_ref, w3_ref, b3_ref,
                w4_ref, b4_ref, o_ref):
    def lrelu(v):
        # LeakyReLU(negative_slope=0.2), f32 on the VPU.
        return jnp.where(v >= 0, v, 0.2 * v)

    # Layer 1 (concat already fused in the wrapper): [tb, F] @ [F, 1024].
    h = jnp.dot(x_ref[...], w1_ref[...], preferred_element_type=jnp.float32)
    h = lrelu(h + b1_ref[...]).astype(jnp.bfloat16)

    # Layer 2: [tb, 1024] @ [1024, 512].
    h = jnp.dot(h, w2_ref[...], preferred_element_type=jnp.float32)
    h = lrelu(h + b2_ref[...]).astype(jnp.bfloat16)

    # Layer 3: [tb, 512] @ [512, 256]; keep f32 for the final reduction.
    h = jnp.dot(h, w3_ref[...], preferred_element_type=jnp.float32)
    h = lrelu(h + b3_ref[...])

    # Final 256 -> 1 layer as a VPU/XLU lane reduction (w4 is a (1,256) f32
    # row), then relayout the (tb, 1) column into a lane-dense (1, tb) row so
    # the store / HBM writeback is unmasked and dense.
    col = jnp.sum(h * w4_ref[...], axis=-1, keepdims=True) + b4_ref[...]   # (tb, 1)
    tb = o_ref.shape[-1]
    o_ref[...] = col.reshape(1, 1, tb)


# ------------------------------- wrapper ---------------------------------- #
def _round_up(x, m):
    return ((x + m - 1) // m) * m


def _chip_config():
    """(default batch tile, vmem_limit_bytes, has_two_tensorcores)."""
    try:
        kind = jax.devices()[0].device_kind.lower()
    except Exception:
        kind = ""
    if "v5" in kind:
        return 1024, 64 * 1024 * 1024, False    # 128 MiB physical VMEM
    if "v6" in kind:
        return 2048, 96 * 1024 * 1024, False    # 128 MiB physical VMEM
    # v7x (2 TCs, 64 MiB VMEM per TC) or unknown: stay conservative on VMEM.
    return 1024, 48 * 1024 * 1024, True


def discriminator_forward(data, conditions, kparams, *, tile_b=None):
    """data: [B, input_dim], conditions: [B, condition_dim] -> [B, 1] f32."""
    (w1, b1), (w2, b2), (w3, b3), (w4, b4) = kparams
    B = data.shape[0]

    # Fused concat + bf16 input cast in the wrapper (cheap; 16 features).
    x = jnp.concatenate(
        [data.astype(jnp.bfloat16), conditions.astype(jnp.bfloat16)], axis=-1)
    F = x.shape[-1]

    tb_default, vmem_limit, two_core = _chip_config()
    tb = tile_b if tile_b is not None else tb_default
    if B >= 128:
        tb = min(tb, _round_up(B, 128))     # lane-dense output rows
    else:
        tb = min(tb, _round_up(B, 8))       # tiny batch: just keep sublane grain
    if two_core and B > 256 and pl.cdiv(B, tb) < 2:
        # Keep >= 2 grid steps so the "parallel" axis feeds both TensorCores.
        tb = max(128, _round_up(pl.cdiv(B, 2), 128))

    B_pad = _round_up(B, tb)
    if B_pad != B:
        x = jnp.pad(x, ((0, B_pad - B), (0, 0)))
    num_tiles = B_pad // tb

    x_spec = pl.BlockSpec((tb, F), lambda i: (i, 0))
    # Full-array blocks with a constant index -> weights/biases stay
    # VMEM-resident across grid steps while x / out tiles are pipelined.
    # TODO(synk): pipeline_mode=pl.Buffered(1) on these would save ~3 MiB of
    # duplicated weight buffers on v7x; omitted to keep compile risk low.
    def const_spec(a):
        return pl.BlockSpec(a.shape, lambda i: (0, 0))

    flops = 2 * B_pad * (F * H1 + H1 * H2 + H2 * H3 + H3)
    weight_bytes = int((w1.size + w2.size + w3.size) * 2 + w4.size * 4
                       + (b1.size + b2.size + b3.size + b4.size) * 4)
    io_bytes = int(B_pad * F * 2 + B_pad * 4)
    cost = pl.CostEstimate(flops=int(flops), transcendentals=0,
                           bytes_accessed=weight_bytes + io_bytes)

    out = pl.pallas_call(
        disc_kernel,
        out_shape=jax.ShapeDtypeStruct((num_tiles, 1, tb), jnp.float32),
        grid=(num_tiles,),
        in_specs=[
            x_spec,
            const_spec(w1), const_spec(b1),
            const_spec(w2), const_spec(b2),
            const_spec(w3), const_spec(b3),
            const_spec(w4), const_spec(b4),
        ],
        out_specs=pl.BlockSpec((1, 1, tb), lambda i: (i, 0, 0)),
        compiler_params=pltpu.CompilerParams(
            dimension_semantics=("parallel",),    # megacore sharding on v7x
            vmem_limit_bytes=vmem_limit),
        cost_estimate=cost,
    )(x, w1, b1, w2, b2, w3, b3, w4, b4)

    return out.reshape(B_pad, 1)[:B]


# ------------------------- parameter construction ------------------------- #
def linear_init(key, in_dim, out_dim):
    """PyTorch-style nn.Linear init (uniform +-1/sqrt(fan_in)). W is (out, in)."""
    kw, kb = jax.random.split(key)
    bound = 1.0 / jnp.sqrt(jnp.float32(in_dim))
    w = jax.random.uniform(kw, (out_dim, in_dim), jnp.float32, -bound, bound)
    b = jax.random.uniform(kb, (out_dim,), jnp.float32, -bound, bound)
    return w, b


def spectral_normalize(w, key, n_power_iterations=1, eps=1e-12):
    """W / sigma(W) via power iteration, like torch.nn.utils.spectral_norm."""
    # TODO(synk): trained PyTorch keeps a persistent `u` buffer; here a fresh
    # random `u` with one power iteration is used (preprocessing, not kernel).
    u = jax.random.normal(key, (w.shape[0],), jnp.float32)
    u = u / (jnp.linalg.norm(u) + eps)
    v = None
    for _ in range(n_power_iterations):
        v = w.T @ u
        v = v / (jnp.linalg.norm(v) + eps)
        u = w @ v
        u = u / (jnp.linalg.norm(u) + eps)
    sigma = u @ (w @ v)
    return w / sigma


def build_params(key, input_dim, condition_dim):
    dims = [(input_dim + condition_dim, H1), (H1, H2), (H2, H3), (H3, 1)]
    keys = jax.random.split(key, 2 * len(dims))
    layers = []
    for i, (d_in, d_out) in enumerate(dims):
        w, b = linear_init(keys[2 * i], d_in, d_out)
        if i < 3:  # spectral norm on all but the output layer
            w = spectral_normalize(w, keys[2 * i + 1])
        layers.append((w.T, b.reshape(1, d_out)))   # W as (in, out), bias (1, out)

    (w1, b1), (w2, b2), (w3, b3), (w4, b4) = layers
    return ((w1.astype(jnp.bfloat16), b1),           # [in+cond, 1024] bf16
            (w2.astype(jnp.bfloat16), b2),           # [1024, 512]  bf16
            (w3.astype(jnp.bfloat16), b3),           # [512, 256]   bf16
            (w4.T.astype(jnp.float32), b4))          # (1, 256) f32 row, b4 (1,1)


# ----------------------------- reference (JAX) ----------------------------- #
def reference_forward(data, conditions, kparams):
    (w1, b1), (w2, b2), (w3, b3), (w4, b4) = kparams
    lrelu = lambda v: jnp.where(v >= 0, v, 0.2 * v)
    x = jnp.concatenate(
        [data.astype(jnp.bfloat16), conditions.astype(jnp.bfloat16)], axis=-1)
    h = lrelu(jnp.dot(x, w1, preferred_element_type=jnp.float32) + b1)
    h = lrelu(jnp.dot(h.astype(jnp.bfloat16), w2,
                      preferred_element_type=jnp.float32) + b2)
    h = lrelu(jnp.dot(h.astype(jnp.bfloat16), w3,
                      preferred_element_type=jnp.float32) + b3)
    return jnp.sum(h * w4, axis=-1, keepdims=True) + b4


if __name__ == "__main__":
    input_dim = 12       # per module docstring: 12-dim data sample X
    condition_dim = 4    # small condition vector Y
    batch = 2

    root = jax.random.PRNGKey(0)
    k_data, k_cond, k_params = jax.random.split(root, 3)
    data = jax.random.normal(k_data, (batch, input_dim), jnp.float32)
    conditions = jax.random.normal(k_cond, (batch, condition_dim), jnp.float32)

    params = build_params(k_params, input_dim, condition_dim)

    out = discriminator_forward(data, conditions, params)
    out = jax.block_until_ready(out)

    ref = reference_forward(data, conditions, params)
    assert out.shape == (batch, 1)
    # bf16 weights/activations -> loosened tolerance.
    assert jnp.allclose(out, ref, atol=1e-2, rtol=1e-2), (out, ref)

    print("KERNEL_OK")
</pallas_src>

<mosaic_0001>
module attributes {stable_mosaic.version = 11 : i64} {
  func.func @disc_kernel(%arg0: i32, %arg1: memref<8x16xbf16, #tpu.memory_space<vmem>>, %arg2: memref<16x1024xbf16, #tpu.memory_space<vmem>>, %arg3: memref<1x1024xf32, #tpu.memory_space<vmem>>, %arg4: memref<1024x512xbf16, #tpu.memory_space<vmem>>, %arg5: memref<1x512xf32, #tpu.memory_space<vmem>>, %arg6: memref<512x256xbf16, #tpu.memory_space<vmem>>, %arg7: memref<1x256xf32, #tpu.memory_space<vmem>>, %arg8: memref<1x256xf32, #tpu.memory_space<vmem>>, %arg9: memref<1x1xf32, #tpu.memory_space<vmem>>, %arg10: memref<1x1x8xf32, #tpu.memory_space<vmem>>) attributes {dimension_semantics = [#tpu.dimension_semantics<parallel>], iteration_bounds = array<i64: 1>, scalar_prefetch = 0 : i64, scratch_operands = 0 : i64, tpu.core_type = #tpu.core_type<tc>, window_params = [{transform_indices = @transform_0, window_bounds = array<i64: 8, 16>}, {pipeline_mode = #tpu.pipeline_mode<synchronous>, transform_indices = @transform_1, window_bounds = array<i64: 16, 1024>}, {pipeline_mode = #tpu.pipeline_mode<synchronous>, transform_indices = @transform_2, window_bounds = array<i64: 1, 1024>}, {pipeline_mode = #tpu.pipeline_mode<synchronous>, transform_indices = @transform_3, window_bounds = array<i64: 1024, 512>}, {pipeline_mode = #tpu.pipeline_mode<synchronous>, transform_indices = @transform_4, window_bounds = array<i64: 1, 512>}, {pipeline_mode = #tpu.pipeline_mode<synchronous>, transform_indices = @transform_5, window_bounds = array<i64: 512, 256>}, {pipeline_mode = #tpu.pipeline_mode<synchronous>, transform_indices = @transform_6, window_bounds = array<i64: 1, 256>}, {pipeline_mode = #tpu.pipeline_mode<synchronous>, transform_indices = @transform_7, window_bounds = array<i64: 1, 256>}, {pipeline_mode = #tpu.pipeline_mode<synchronous>, transform_indices = @transform_8, window_bounds = array<i64: 1, 1>}, {transform_indices = @transform_9, window_bounds = array<i64: 1, 1, 8>}]} {
    %c0 = arith.constant 0 : index
    %c0_0 = arith.constant 0 : index
    %0 = vector.load %arg1[%c0, %c0_0] : memref<8x16xbf16, #tpu.memory_space<vmem>>, vector<8x16xbf16>
    %c0_1 = arith.constant 0 : index
    %c0_2 = arith.constant 0 : index
    %1 = vector.load %arg2[%c0_1, %c0_2] : memref<16x1024xbf16, #tpu.memory_space<vmem>>, vector<16x1024xbf16>
    %cst = arith.constant dense<0.000000e+00> : vector<8x1024xf32>
    %2 = tpu.matmul %0, %1, %cst {dimension_numbers = #tpu.dot_dimension_numbers<[1], [0], [0], [1], [0, 0, 1, 1], [], []>} : vector<8x16xbf16>, vector<16x1024xbf16>, vector<8x1024xf32> -> vector<8x1024xf32>
    %c0_3 = arith.constant 0 : index
    %c0_4 = arith.constant 0 : index
    %3 = vector.load %arg3[%c0_3, %c0_4] : memref<1x1024xf32, #tpu.memory_space<vmem>>, vector<1x1024xf32>
    %4 = vector.broadcast %3 : vector<1x1024xf32> to vector<8x1024xf32>
    %5 = arith.addf %2, %4 : vector<8x1024xf32>
    %cst_5 = arith.constant 0.000000e+00 : f32
    %6 = vector.broadcast %cst_5 : f32 to vector<8x1024xf32>
    %7 = arith.cmpf oge, %5, %6 : vector<8x1024xf32>
    %cst_6 = arith.constant 2.000000e-01 : f32
    %8 = vector.broadcast %cst_6 : f32 to vector<8x1024xf32>
    %9 = arith.mulf %8, %5 : vector<8x1024xf32>
    %10 = arith.select %7, %5, %9 : vector<8x1024xi1>, vector<8x1024xf32>
    %11 = arith.truncf %10 : vector<8x1024xf32> to vector<8x1024xbf16>
    %c0_7 = arith.constant 0 : index
    %c0_8 = arith.constant 0 : index
    %12 = vector.load %arg4[%c0_7, %c0_8] : memref<1024x512xbf16, #tpu.memory_space<vmem>>, vector<1024x512xbf16>
    %cst_9 = arith.constant dense<0.000000e+00> : vector<8x512xf32>
    %13 = tpu.matmul %11, %12, %cst_9 {dimension_numbers = #tpu.dot_dimension_numbers<[1], [0], [0], [1], [0, 0, 1, 1], [], []>} : vector<8x1024xbf16>, vector<1024x512xbf16>, vector<8x512xf32> -> vector<8x512xf32>
    %c0_10 = arith.constant 0 : index
    %c0_11 = arith.constant 0 : index
    %14 = vector.load %arg5[%c0_10, %c0_11] : memref<1x512xf32, #tpu.memory_space<vmem>>, vector<1x512xf32>
    %15 = vector.broadcast %14 : vector<1x512xf32> to vector<8x512xf32>
    %16 = arith.addf %13, %15 : vector<8x512xf32>
    %cst_12 = arith.constant 0.000000e+00 : f32
    %17 = vector.broadcast %cst_12 : f32 to vector<8x512xf32>
    %18 = arith.cmpf oge, %16, %17 : vector<8x512xf32>
    %cst_13 = arith.constant 2.000000e-01 : f32
    %19 = vector.broadcast %cst_13 : f32 to vector<8x512xf32>
    %20 = arith.mulf %19, %16 : vector<8x512xf32>
    %21 = arith.select %18, %16, %20 : vector<8x512xi1>, vector<8x512xf32>
    %22 = arith.truncf %21 : vector<8x512xf32> to vector<8x512xbf16>
    %c0_14 = arith.constant 0 : index
    %c0_15 = arith.constant 0 : index
    %23 = vector.load %arg6[%c0_14, %c0_15] : memref<512x256xbf16, #tpu.memory_space<vmem>>, vector<512x256xbf16>
    %cst_16 = arith.constant dense<0.000000e+00> : vector<8x256xf32>
    %24 = tpu.matmul %22, %23, %cst_16 {dimension_numbers = #tpu.dot_dimension_numbers<[1], [0], [0], [1], [0, 0, 1, 1], [], []>} : vector<8x512xbf16>, vector<512x256xbf16>, vector<8x256xf32> -> vector<8x256xf32>
    %c0_17 = arith.constant 0 : index
    %c0_18 = arith.constant 0 : index
    %25 = vector.load %arg7[%c0_17, %c0_18] : memref<1x256xf32, #tpu.memory_space<vmem>>, vector<1x256xf32>
    %26 = vector.broadcast %25 : vector<1x256xf32> to vector<8x256xf32>
    %27 = arith.addf %24, %26 : vector<8x256xf32>
    %cst_19 = arith.constant 0.000000e+00 : f32
    %28 = vector.broadcast %cst_19 : f32 to vector<8x256xf32>
    %29 = arith.cmpf oge, %27, %28 : vector<8x256xf32>
    %cst_20 = arith.constant 2.000000e-01 : f32
    %30 = vector.broadcast %cst_20 : f32 to vector<8x256xf32>
    %31 = arith.mulf %30, %27 : vector<8x256xf32>
    %32 = arith.select %29, %27, %31 : vector<8x256xi1>, vector<8x256xf32>
    %c0_21 = arith.constant 0 : index
    %c0_22 = arith.constant 0 : index
    %33 = vector.load %arg8[%c0_21, %c0_22] : memref<1x256xf32, #tpu.memory_space<vmem>>, vector<1x256xf32>
    %34 = vector.broadcast %33 : vector<1x256xf32> to vector<8x256xf32>
    %35 = arith.mulf %32, %34 : vector<8x256xf32>
    %cst_23 = arith.constant dense<0.000000e+00> : vector<8xf32>
    %36 = vector.multi_reduction <add>, %35, %cst_23 [1] : vector<8x256xf32> to vector<8xf32>
    %37 = vector.shape_cast %36 : vector<8xf32> to vector<8x1xf32>
    %c0_24 = arith.constant 0 : index
    %c0_25 = arith.constant 0 : index
    %38 = vector.load %arg9[%c0_24, %c0_25] : memref<1x1xf32, #tpu.memory_space<vmem>>, vector<1x1xf32>
    %39 = vector.broadcast %38 : vector<1x1xf32> to vector<8x1xf32>
    %40 = arith.addf %37, %39 : vector<8x1xf32>
    %41 = vector.shape_cast %40 : vector<8x1xf32> to vector<1x1x8xf32>
    %c0_26 = arith.constant 0 : index
    %c0_27 = arith.constant 0 : index
    %c0_28 = arith.constant 0 : index
    %42 = vector.load %arg10[%c0_26, %c0_27, %c0_28] : memref<1x1x8xf32, #tpu.memory_space<vmem>>, vector<1x1x8xf32>
    tpu.vector_store %arg10[%c0_26, %c0_27, %c0_28], %41 {strides = array<i32>} : memref<1x1x8xf32, #tpu.memory_space<vmem>>, vector<1x1x8xf32>,
    return
  }
  func.func @transform_0(%arg0: i32) -> (i32, i32) {
    %c0_i32 = arith.constant 0 : i32
    %c0_i32_0 = arith.constant 0 : i32
    return %arg0, %c0_i32 : i32, i32
  }
  func.func @transform_1(%arg0: i32) -> (i32, i32) {
    %c0_i32 = arith.constant 0 : i32
    %c0_i32_0 = arith.constant 0 : i32
    %c0_i32_1 = arith.constant 0 : i32
    return %c0_i32, %c0_i32_0 : i32, i32
  }
  func.func @transform_2(%arg0: i32) -> (i32, i32) {
    %c0_i32 = arith.constant 0 : i32
    %c0_i32_0 = arith.constant 0 : i32
    %c0_i32_1 = arith.constant 0 : i32
    return %c0_i32, %c0_i32_0 : i32, i32
  }
  func.func @transform_3(%arg0: i32) -> (i32, i32) {
    %c0_i32 = arith.constant 0 : i32
    %c0_i32_0 = arith.constant 0 : i32
    %c0_i32_1 = arith.constant 0 : i32
    return %c0_i32, %c0_i32_0 : i32, i32
  }
  func.func @transform_4(%arg0: i32) -> (i32, i32) {
    %c0_i32 = arith.constant 0 : i32
    %c0_i32_0 = arith.constant 0 : i32
    %c0_i32_1 = arith.constant 0 : i32
    return %c0_i32, %c0_i32_0 : i32, i32
  }
  func.func @transform_5(%arg0: i32) -> (i32, i32) {
    %c0_i32 = arith.constant 0 : i32
    %c0_i32_0 = arith.constant 0 : i32
    %c0_i32_1 = arith.constant 0 : i32
    return %c0_i32, %c0_i32_0 : i32, i32
  }
  func.func @transform_6(%arg0: i32) -> (i32, i32) {
    %c0_i32 = arith.constant 0 : i32
    %c0_i32_0 = arith.constant 0 : i32
    %c0_i32_1 = arith.constant 0 : i32
    return %c0_i32, %c0_i32_0 : i32, i32
  }
  func.func @transform_7(%arg0: i32) -> (i32, i32) {
    %c0_i32 = arith.constant 0 : i32
    %c0_i32_0 = arith.constant 0 : i32
    %c0_i32_1 = arith.constant 0 : i32
    return %c0_i32, %c0_i32_0 : i32, i32
  }
  func.func @transform_8(%arg0: i32) -> (i32, i32) {
    %c0_i32 = arith.constant 0 : i32
    %c0_i32_0 = arith.constant 0 : i32
    %c0_i32_1 = arith.constant 0 : i32
    return %c0_i32, %c0_i32_0 : i32, i32
  }
  func.func @transform_9(%arg0: i32) -> (i32, i32, i32) {
    %c0_i32 = arith.constant 0 : i32
    %c0_i32_0 = arith.constant 0 : i32
    %c0_i32_1 = arith.constant 0 : i32
    return %arg0, %c0_i32, %c0_i32_0 : i32, i32, i32
  }
}

</mosaic_0001>

<llo_original>
// kernel: tpu_custom_call.1
$region0: #{tpu_custom_call.1}
  #allocation0 [shape = 'u32[]', space=smem, size = 0x4, offset = 0x4, fixed_abs, tag = 'smem constant byte address 0x4 - core index']
  #allocation1 [shape = 'u32[144,128]{1,0:T(1,128)}', space=vmem, size = 0x12000, scoped, tag = 'internal scratch']
  #allocation2 [shape = 'f32[1,1]{1,0:T(1,128)S(1)}', space=vmem, size = 0x200, scoped, tag = 'scoped memory for tpu_custom_call.1']
  %s0 = inlined_call_operand.hbm [shape: bf16[8,16], index: 0, kind: input, shape index: {}]
  %s1 = inlined_call_operand.hbm [shape: bf16[16,1024], index: 1, kind: input, shape index: {}]
  %s2 = inlined_call_operand.vmem [shape: f32[1,1024], index: 2, kind: input, shape index: {}]
  %s3 = inlined_call_operand.hbm [shape: bf16[1024,512], index: 3, kind: input, shape index: {}]
  %s4 = inlined_call_operand.vmem [shape: f32[1,512], index: 4, kind: input, shape index: {}]
  %s5 = inlined_call_operand.hbm [shape: bf16[512,256], index: 5, kind: input, shape index: {}]
  %s6 = inlined_call_operand.vmem [shape: f32[1,256], index: 6, kind: input, shape index: {}]
  %s7 = inlined_call_operand.vmem [shape: f32[1,256], index: 7, kind: input, shape index: {}]
  %s8 = inlined_call_operand.<no memory space> [shape: f32[1,1], index: 8, kind: input, shape index: {}]
  %s9 = inlined_call_operand.hbm [shape: f32[1,1,8], index: 9, kind: output, shape index: {}]
  %s10 = sld [smem:[#allocation0]]
  $region62: #{tpu_custom_call.1} parent=0
    _
  %s12 = ssub.s32 1, %s10
  %s13 = scalar_select 0, %s12, %s10
  %v14 = vstv %s8
  %15 = vst [vmem:[#allocation2] sm:$0x1] %v14
  $region1: #{tpu_custom_call.1} parent=0
    #allocation3 [shape = 'u8[2048]{0}', space=vmem, size = 0x800, scoped, tag = 'input window, operand 0, single buffered']
    #allocation4 [shape = 's32[1]{0}', space=sflag, size = 0x4, scoped, tag = 'scoped memory for tpu_custom_call.1']
    #allocation5 [shape = 's32[1]{0}', space=sflag, size = 0x4, scoped, tag = 'scoped memory for tpu_custom_call.1']
    #allocation6 [shape = 'u8[32768]{0}', space=vmem, size = 0x8000, scoped, tag = 'input window, operand 1, single buffered']
    #allocation7 [shape = 's32[1]{0}', space=sflag, size = 0x4, scoped, tag = 'scoped memory for tpu_custom_call.1']
    #allocation8 [shape = 'u8[1048576]{0}', space=vmem, size = 0x100000, scoped, tag = 'input window, operand 3, single buffered']
    #allocation9 [shape = 'u8[262144]{0}', space=vmem, size = 0x40000, scoped, tag = 'input window, operand 5, single buffered']
    #allocation10 [shape = 's32[1]{0}', space=sflag, size = 0x4, scoped, tag = 'scoped memory for tpu_custom_call.1']
    #allocation11 [shape = 'u8[512]{0}', space=vmem, size = 0x400, scoped, tag = 'output window, operand 0, single buffered']
    %16 = vsyncpa [#allocation4], 0
    %17 = vsyncpa [#allocation7], 0
    %18 = vsyncpa [#allocation10], 0
    %19 = vsyncpa [#allocation5], 0
    // Predicated region
    $region2: #{tpu_custom_call.1} parent=1 // pred_check
      _
    $region3: #{tpu_custom_call.1} parent=1 // pred_check_branch
      %21 = sbr.rel (0) target = $region5
    $region4: #{tpu_custom_call.1} parent=1 // pred_region
      %s23 = ssub.s32 64, 64
      %24 = vsyncadd [#allocation4], %s23
      %s26 = sshll.u32 [#allocation3], 4
      %s27 = int_to_ptr.vmem [resolvable:$true] %s26
      %29 = dma.hbm_to_vmem [thread:$0]  %s0, 64, %s27, [#allocation4]
    $region5: #{tpu_custom_call.1} parent=1 // pred_fallthru
      _
    // Predicated region
    $region6: #{tpu_custom_call.1} parent=1 // pred_check
      _
    $region7: #{tpu_custom_call.1} parent=1 // pred_check_branch
      %31 = sbr.rel (0) target = $region9
    $region8: #{tpu_custom_call.1} parent=1 // pred_region
      %s33 = ssub.s32 1024, 1024
      %34 = vsyncadd [#allocation7], %s33
      %s35 = sshll.u32 [#allocation6], 4
      %s36 = int_to_ptr.vmem [resolvable:$true] %s35
      %41 = dma.hbm_to_vmem [thread:$0]  %s1, 1024, %s36, [#allocation7], 512, 512, 32
    $region9: #{tpu_custom_call.1} parent=1 // pred_fallthru
      _
    // Predicated region
    $region10: #{tpu_custom_call.1} parent=1 // pred_check
      _
    $region11: #{tpu_custom_call.1} parent=1 // pred_check_branch
      %43 = sbr.rel (0) target = $region13
    $region12: #{tpu_custom_call.1} parent=1 // pred_region
      _
    $region13: #{tpu_custom_call.1} parent=1 // pred_fallthru
      _
    // Predicated region
    $region14: #{tpu_custom_call.1} parent=1 // pred_check
      _
    $region15: #{tpu_custom_call.1} parent=1 // pred_check_branch
      %45 = sbr.rel (0) target = $region17
    $region16: #{tpu_custom_call.1} parent=1 // pred_region
      %s47 = ssub.s32 32768, 32768
      %48 = vsyncadd [#allocation7], %s47
      %s49 = sshll.u32 [#allocation8], 4
      %s50 = int_to_ptr.vmem [resolvable:$true] %s49
      %55 = dma.hbm_to_vmem [thread:$0]  %s3, 32768, %s50, [#allocation7], 256, 256, 16
    $region17: #{tpu_custom_call.1} parent=1 // pred_fallthru
      _
    // Predicated region
    $region18: #{tpu_custom_call.1} parent=1 // pred_check
      _
    $region19: #{tpu_custom_call.1} parent=1 // pred_check_branch
      %57 = sbr.rel (0) target = $region21
    $region20: #{tpu_custom_call.1} parent=1 // pred_region
      _
    $region21: #{tpu_custom_call.1} parent=1 // pred_fallthru
      _
    // Predicated region
    $region22: #{tpu_custom_call.1} parent=1 // pred_check
      _
    $region23: #{tpu_custom_call.1} parent=1 // pred_check_branch
      %59 = sbr.rel (0) target = $region25
    $region24: #{tpu_custom_call.1} parent=1 // pred_region
      %s61 = ssub.s32 8192, 8192
      %62 = vsyncadd [#allocation10], %s61
      %s63 = sshll.u32 [#allocation9], 4
      %s64 = int_to_ptr.vmem [resolvable:$true] %s63
      %69 = dma.hbm_to_vmem [thread:$0]  %s5, 8192, %s64, [#allocation10], 128, 128, 8
    $region25: #{tpu_custom_call.1} parent=1 // pred_fallthru
      _
    // Predicated region
    $region26: #{tpu_custom_call.1} parent=1 // pred_check
      _
    $region27: #{tpu_custom_call.1} parent=1 // pred_check_branch
      %71 = sbr.rel (0) target = $region29
    $region28: #{tpu_custom_call.1} parent=1 // pred_region
      _
    $region29: #{tpu_custom_call.1} parent=1 // pred_fallthru
      _
    // Predicated region
    $region30: #{tpu_custom_call.1} parent=1 // pred_check
      _
    $region31: #{tpu_custom_call.1} parent=1 // pred_check_branch
      %73 = sbr.rel (0) target = $region33
    $region32: #{tpu_custom_call.1} parent=1 // pred_region
      _
    $region33: #{tpu_custom_call.1} parent=1 // pred_fallthru
      _
    // Predicated region
    $region34: #{tpu_custom_call.1} parent=1 // pred_check
      _
    $region35: #{tpu_custom_call.1} parent=1 // pred_check_branch
      %75 = sbr.rel (0) target = $region37
    $region36: #{tpu_custom_call.1} parent=1 // pred_region
      _
    $region37: #{tpu_custom_call.1} parent=1 // pred_fallthru
      _
    // Predicated region
    $region38: #{tpu_custom_call.1} parent=1 // pred_check
      _
    $region39: #{tpu_custom_call.1} parent=1 // pred_check_branch
      %77 = sbr.rel (0) target = $region41
    $region40: #{tpu_custom_call.1} parent=1 // pred_region
      %78 = dma.done [#allocation4], 64
    $region41: #{tpu_custom_call.1} parent=1 // pred_fallthru
      _
    // Predicated region
    $region42: #{tpu_custom_call.1} parent=1 // pred_check
      _
    $region43: #{tpu_custom_call.1} parent=1 // pred_check_branch
      %80 = sbr.rel (0) target = $region45
    $region44: #{tpu_custom_call.1} parent=1 // pred_region
      %81 = dma.done [#allocation7], 1024
    $region45: #{tpu_custom_call.1} parent=1 // pred_fallthru
      _
    // Predicated region
    $region46: #{tpu_custom_call.1} parent=1 // pred_check
      _
    $region47: #{tpu_custom_call.1} parent=1 // pred_check_branch
      %83 = sbr.rel (0) target = $region49
    $region48: #{tpu_custom_call.1} parent=1 // pred_region
      %84 = dma.done [#allocation7], 32768
    $region49: #{tpu_custom_call.1} parent=1 // pred_fallthru
      _
    // Predicated region
    $region50: #{tpu_custom_call.1} parent=1 // pred_check
      _
    $region51: #{tpu_custom_call.1} parent=1 // pred_check_branch
      %86 = sbr.rel (0) target = $region53
    $region52: #{tpu_custom_call.1} parent=1 // pred_region
      %87 = dma.done [#allocation10], 8192
    $region53: #{tpu_custom_call.1} parent=1 // pred_fallthru
      _
    %v89 = vld [vmem:[#allocation3] sm:$0xf]
    %v90 = vld [vmem:[#allocation6] sm:$0xff]
    %v91 = vld [vmem:[#allocation6 + $0x8] sm:$0xff]
    %v92 = vld [vmem:[#allocation6 + $0x10] sm:$0xff]
    %v93 = vld [vmem:[#allocation6 + $0x18] sm:$0xff]
    %v94 = vld [vmem:[#allocation6 + $0x20] sm:$0xff]
    %v95 = vld [vmem:[#allocation6 + $0x28] sm:$0xff]
    %v96 = vld [vmem:[#allocation6 + $0x30] sm:$0xff]
    %v97 = vld [vmem:[#allocation6 + $0x38] sm:$0xff]
    %v98 = vld [vmem:[%s2] sm:$0xff]
    %v100 = vlaneseq
    %v101 = vshrl.u32 %v100, 7
    %v102 = vsub.s32 0, %v101
    %v103 = vrot.slane %v98, %v102
    %v104 = vlaneseq
    %v105 = vshrl.u32 %v104, 7
    %v106 = vsub.s32 1, %v105
    %v107 = vrot.slane %v98, %v106
    %v108 = vlaneseq
    %v109 = vshrl.u32 %v108, 7
    %v110 = vsub.s32 2, %v109
    %v111 = vrot.slane %v98, %v110
    %v112 = vlaneseq
    %v113 = vshrl.u32 %v112, 7
    %v114 = vsub.s32 3, %v113
    %v115 = vrot.slane %v98, %v114
    %v116 = vlaneseq
    %v117 = vshrl.u32 %v116, 7
    %v118 = vsub.s32 4, %v117
    %v119 = vrot.slane %v98, %v118
    %v120 = vlaneseq
    %v121 = vshrl.u32 %v120, 7
    %v122 = vsub.s32 5, %v121
    %v123 = vrot.slane %v98, %v122
    %v124 = vlaneseq
    %v125 = vshrl.u32 %v124, 7
    %v126 = vsub.s32 6, %v125
    %v127 = vrot.slane %v98, %v126
    %v128 = vlaneseq
    %v129 = vshrl.u32 %v128, 7
    %v130 = vsub.s32 7, %v129
    %v131 = vrot.slane %v98, %v130
    %v148 = vunpack.c.l.b16 %v90
    %v149 = vunpack.c.h.b16 %v90
    %v150 = vunpack.c.l.b16 %v91
    %v151 = vunpack.c.h.b16 %v91
    %v152 = vunpack.c.l.b16 %v92
    %v153 = vunpack.c.h.b16 %v92
    %v154 = vunpack.c.l.b16 %v93
    %v155 = vunpack.c.h.b16 %v93
    %v156 = vunpack.c.l.b16 %v94
    %v157 = vunpack.c.h.b16 %v94
    %v158 = vunpack.c.l.b16 %v95
    %v159 = vunpack.c.h.b16 %v95
    %v160 = vunpack.c.l.b16 %v96
    %v161 = vunpack.c.h.b16 %v96
    %v162 = vunpack.c.l.b16 %v97
    %v163 = vunpack.c.h.b16 %v97
    %v164 = vpack.c.b16 %v156, %v148
    %v165 = vpack.c.b16 %v157, %v149
    %v166 = vpack.c.b16 %v158, %v150
    %v167 = vpack.c.b16 %v159, %v151
    %v168 = vpack.c.b16 %v160, %v152
    %v169 = vpack.c.b16 %v161, %v153
    %v170 = vpack.c.b16 %v162, %v154
    %v171 = vpack.c.b16 %v163, %v155
    %vm180 = vcmask 130048
    %v182 = vsel %vm180, %v89, 0
    %184 = vmatprep.subr.bf16.mxu0 %v165
    %185 = vmatpush1.bf16.msra.mxu0 %v164
    %186 = vmatprep.subr.bf16.mxu0 0
    %187 = vmatpush1.bf16.msra.mxu0 0
    %188 = vmatprep.subr.bf16.mxu0 0
    %189 = vmatpush1.bf16.msra.mxu0 0
    %190 = vmatprep.subr.bf16.mxu0 0
    %191 = vmatpush1.bf16.msra.mxu0 0
    %192 = vmatprep.subr.bf16.mxu0 0
    %193 = vmatpush1.bf16.msra.mxu0 0
    %194 = vmatprep.subr.bf16.mxu0 0
    %195 = vmatpush1.bf16.msra.mxu0 0
    %196 = vmatprep.subr.bf16.mxu0 0
    %197 = vmatpush1.bf16.msra.mxu0 0
    %198 = vmatprep.subr.bf16.mxu0 0
    %199 = vmatpush1.bf16.msra.mxu0 0
    %200 = vmatprep.subr.bf16.mxu0 0
    %201 = vmatpush1.bf16.msra.mxu0 0
    %202 = vmatprep.subr.bf16.mxu0 0
    %203 = vmatpush1.bf16.msra.mxu0 0
    %204 = vmatprep.subr.bf16.mxu0 0
    %205 = vmatpush1.bf16.msra.mxu0 0
    %206 = vmatprep.subr.bf16.mxu0 0
    %207 = vmatpush1.bf16.msra.mxu0 0
    %208 = vmatprep.subr.bf16.mxu0 0
    %209 = vmatpush1.bf16.msra.mxu0 0
    %210 = vmatprep.subr.bf16.mxu0 0
    %211 = vmatpush1.bf16.msra.mxu0 0
    %212 = vmatprep.subr.bf16.mxu0 0
    %213 = vmatpush1.bf16.msra.mxu0 0
    %214 = vmatprep.subr.bf16.mxu0 0
    %215 = vmatpush1.bf16.msra.mxu0 0
    %216 = vmatprep.mubr.bf16.mxu0 0
    %217 = vmatmul.mubr.bf16.gmra.mrb[0].mxu0 %v182
    %v218 = vpop.f32.mrb[0].mxu0
    %v219 = vadd.f32 %v103, %v218
    %v220 = vpop.f32.mrb[0].mxu0
    %v221 = vadd.f32 %v107, %v220
    %v222 = vpop.f32.mrb[0].mxu0
    %v223 = vpop.f32.mrb[0].mxu0
    %224 = vdwg.mxu0
    %225 = vmatprep.subr.bf16.mxu0 %v167
    %226 = vmatpush1.bf16.msra.mxu0 %v166
    %227 = vmatprep.subr.bf16.mxu0 0
    %228 = vmatpush1.bf16.msra.mxu0 0
    %229 = vmatprep.subr.bf16.mxu0 0
    %230 = vmatpush1.bf16.msra.mxu0 0
    %231 = vmatprep.subr.bf16.mxu0 0
    %232 = vmatpush1.bf16.msra.mxu0 0
    %233 = vmatprep.subr.bf16.mxu0 0
    %234 = vmatpush1.bf16.msra.mxu0 0
    %235 = vmatprep.subr.bf16.mxu0 0
    %236 = vmatpush1.bf16.msra.mxu0 0
    %237 = vmatprep.subr.bf16.mxu0 0
    %238 = vmatpush1.bf16.msra.mxu0 0
    %239 = vmatprep.subr.bf16.mxu0 0
    %240 = vmatpush1.bf16.msra.mxu0 0
    %241 = vmatprep.subr.bf16.mxu0 0
    %242 = vmatpush1.bf16.msra.mxu0 0
    %243 = vmatprep.subr.bf16.mxu0 0
    %244 = vmatpush1.bf16.msra.mxu0 0
    %245 = vmatprep.subr.bf16.mxu0 0
    %246 = vmatpush1.bf16.msra.mxu0 0
    %247 = vmatprep.subr.bf16.mxu0 0
    %248 = vmatpush1.bf16.msra.mxu0 0
    %249 = vmatprep.subr.bf16.mxu0 0
    %250 = vmatpush1.bf16.msra.mxu0 0
    %251 = vmatprep.subr.bf16.mxu0 0
    %252 = vmatpush1.bf16.msra.mxu0 0
    %253 = vmatprep.subr.bf16.mxu0 0
    %254 = vmatpush1.bf16.msra.mxu0 0
    %255 = vmatprep.subr.bf16.mxu0 0
    %256 = vmatpush1.bf16.msra.mxu0 0
    %257 = vmatprep.mubr.bf16.mxu0 0
    %258 = vmatmul.mubr.bf16.gmra.mrb[0].mxu0 %v182
    %v259 = vpop.f32.mrb[0].mxu0
    %v260 = vadd.f32 %v111, %v259
    %v261 = vpop.f32.mrb[0].mxu0
    %v262 = vadd.f32 %v115, %v261
    %v263 = vpop.f32.mrb[0].mxu0
    %v264 = vpop.f32.mrb[0].mxu0
    %265 = vdwg.mxu0
    %266 = vmatprep.subr.bf16.mxu0 %v169
    %267 = vmatpush1.bf16.msra.mxu0 %v168
    %268 = vmatprep.subr.bf16.mxu0 0
    %269 = vmatpush1.bf16.msra.mxu0 0
    %270 = vmatprep.subr.bf16.mxu0 0
    %271 = vmatpush1.bf16.msra.mxu0 0
    %272 = vmatprep.subr.bf16.mxu0 0
    %273 = vmatpush1.bf16.msra.mxu0 0
    %274 = vmatprep.subr.bf16.mxu0 0
    %275 = vmatpush1.bf16.msra.mxu0 0
    %276 = vmatprep.subr.bf16.mxu0 0
    %277 = vmatpush1.bf16.msra.mxu0 0
    %278 = vmatprep.subr.bf16.mxu0 0
    %279 = vmatpush1.bf16.msra.mxu0 0
    %280 = vmatprep.subr.bf16.mxu0 0
    %281 = vmatpush1.bf16.msra.mxu0 0
    %282 = vmatprep.subr.bf16.mxu0 0
    %283 = vmatpush1.bf16.msra.mxu0 0
    %284 = vmatprep.subr.bf16.mxu0 0
    %285 = vmatpush1.bf16.msra.mxu0 0
    %286 = vmatprep.subr.bf16.mxu0 0
    %287 = vmatpush1.bf16.msra.mxu0 0
    %288 = vmatprep.subr.bf16.mxu0 0
    %289 = vmatpush1.bf16.msra.mxu0 0
    %290 = vmatprep.subr.bf16.mxu0 0
    %291 = vmatpush1.bf16.msra.mxu0 0
    %292 = vmatprep.subr.bf16.mxu0 0
    %293 = vmatpush1.bf16.msra.mxu0 0
    %294 = vmatprep.subr.bf16.mxu0 0
    %295 = vmatpush1.bf16.msra.mxu0 0
    %296 = vmatprep.subr.bf16.mxu0 0
    %297 = vmatpush1.bf16.msra.mxu0 0
    %298 = vmatprep.mubr.bf16.mxu0 0
    %299 = vmatmul.mubr.bf16.gmra.mrb[0].mxu0 %v182
    %v300 = vpop.f32.mrb[0].mxu0
    %v301 = vadd.f32 %v119, %v300
    %v302 = vpop.f32.mrb[0].mxu0
    %v303 = vadd.f32 %v123, %v302
    %v304 = vpop.f32.mrb[0].mxu0
    %v305 = vpop.f32.mrb[0].mxu0
    %306 = vdwg.mxu0
    %307 = vmatprep.subr.bf16.mxu0 %v171
    %308 = vmatpush1.bf16.msra.mxu0 %v170
    %309 = vmatprep.subr.bf16.mxu0 0
    %310 = vmatpush1.bf16.msra.mxu0 0
    %311 = vmatprep.subr.bf16.mxu0 0
    %312 = vmatpush1.bf16.msra.mxu0 0
    %313 = vmatprep.subr.bf16.mxu0 0
    %314 = vmatpush1.bf16.msra.mxu0 0
    %315 = vmatprep.subr.bf16.mxu0 0
    %316 = vmatpush1.bf16.msra.mxu0 0
    %317 = vmatprep.subr.bf16.mxu0 0
    %318 = vmatpush1.bf16.msra.mxu0 0
    %319 = vmatprep.subr.bf16.mxu0 0
    %320 = vmatpush1.bf16.msra.mxu0 0
    %321 = vmatprep.subr.bf16.mxu0 0
    %322 = vmatpush1.bf16.msra.mxu0 0
    %323 = vmatprep.subr.bf16.mxu0 0
    %324 = vmatpush1.bf16.msra.mxu0 0
    %325 = vmatprep.subr.bf16.mxu0 0
    %326 = vmatpush1.bf16.msra.mxu0 0
    %327 = vmatprep.subr.bf16.mxu0 0
    %328 = vmatpush1.bf16.msra.mxu0 0
    %329 = vmatprep.subr.bf16.mxu0 0
    %330 = vmatpush1.bf16.msra.mxu0 0
    %331 = vmatprep.subr.bf16.mxu0 0
    %332 = vmatpush1.bf16.msra.mxu0 0
    %333 = vmatprep.subr.bf16.mxu0 0
    %334 = vmatpush1.bf16.msra.mxu0 0
    %335 = vmatprep.subr.bf16.mxu0 0
    %336 = vmatpush1.bf16.msra.mxu0 0
    %337 = vmatprep.subr.bf16.mxu0 0
    %338 = vmatpush1.bf16.msra.mxu0 0
    %339 = vmatprep.mubr.bf16.mxu0 0
    %340 = vmatmul.mubr.bf16.gmra.mrb[0].mxu0 %v182
    %v341 = vpop.f32.mrb[0].mxu0
    %v342 = vadd.f32 %v127, %v341
    %v343 = vpop.f32.mrb[0].mxu0
    %v344 = vadd.f32 %v131, %v343
    %v345 = vpop.f32.mrb[0].mxu0
    %v346 = vpop.f32.mrb[0].mxu0
    %347 = vdwg.mxu0
    %vm348 = vcmp.ge.f32.partialorder %v219, 0.0
    %vm349 = vcmp.ge.f32.partialorder %v221, 0.0
    %vm350 = vcmp.ge.f32.partialorder %v260, 0.0
    %vm351 = vcmp.ge.f32.partialorder %v262, 0.0
    %vm352 = vcmp.ge.f32.partialorder %v301, 0.0
    %vm353 = vcmp.ge.f32.partialorder %v303, 0.0
    %vm354 = vcmp.ge.f32.partialorder %v342, 0.0
    %vm355 = vcmp.ge.f32.partialorder %v344, 0.0
    %v356 = vmul.f32 %v219, 0.2
    %v357 = vmul.f32 %v221, 0.2
    %v358 = vmul.f32 %v260, 0.2
    %v359 = vmul.f32 %v262, 0.2
    %v360 = vmul.f32 %v301, 0.2
    %v361 = vmul.f32 %v303, 0.2
    %v362 = vmul.f32 %v342, 0.2
    %v363 = vmul.f32 %v344, 0.2
    %v364 = vsel %vm348, %v219, %v356
    %v365 = vsel %vm349, %v221, %v357
    %v366 = vsel %vm350, %v260, %v358
    %v367 = vsel %vm351, %v262, %v359
    %v368 = vsel %vm352, %v301, %v360
    %v369 = vsel %vm353, %v303, %v361
    %v370 = vsel %vm354, %v342, %v362
    %v371 = vsel %vm355, %v344, %v363
    %v372 = vpack.c.bf16 %v364, %v364
    %v373 = vpack.c.bf16 %v365, %v365
    %v374 = vpack.c.bf16 %v366, %v366
    %v375 = vpack.c.bf16 %v367, %v367
    %v376 = vpack.c.bf16 %v368, %v368
    %v377 = vpack.c.bf16 %v369, %v369
    %v378 = vpack.c.bf16 %v370, %v370
    %v379 = vpack.c.bf16 %v371, %v371
    %v380 = vld [vmem:[#allocation8] sm:$0xff]
    %v381 = vld [vmem:[#allocation8 + $0x8] sm:$0xff]
    %v382 = vld [vmem:[#allocation8 + $0x10] sm:$0xff]
    %v383 = vld [vmem:[#allocation8 + $0x18] sm:$0xff]
    %v384 = vld [vmem:[#allocation8 + $0x20] sm:$0xff]
    %v385 = vld [vmem:[#allocation8 + $0x28] sm:$0xff]
    %v386 = vld [vmem:[#allocation8 + $0x30] sm:$0xff]
    %v387 = vld [vmem:[#allocation8 + $0x38] sm:$0xff]
    %v388 = vld [vmem:[#allocation8 + $0x40] sm:$0xff]
    %v389 = vld [vmem:[#allocation8 + $0x48] sm:$0xff]
    %v390 = vld [vmem:[#allocation8 + $0x50] sm:$0xff]
    %v391 = vld [vmem:[#allocation8 + $0x58] sm:$0xff]
    %v392 = vld [vmem:[#allocation8 + $0x60] sm:$0xff]
    %v393 = vld [vmem:[#allocation8 + $0x68] sm:$0xff]
    %v394 = vld [vmem:[#allocation8 + $0x70] sm:$0xff]
    %v395 = vld [vmem:[#allocation8 + $0x78] sm:$0xff]
    %v396 = vld [vmem:[#allocation8 + $0x80] sm:$0xff]
    %v397 = vld [vmem:[#allocation8 + $0x88] sm:$0xff]
    %v398 = vld [vmem:[#allocation8 + $0x90] sm:$0xff]
    %v399 = vld [vmem:[#allocation8 + $0x98] sm:$0xff]
    %v400 = vld [vmem:[#allocation8 + $0xa0] sm:$0xff]
    %v401 = vld [vmem:[#allocation8 + $0xa8] sm:$0xff]
    %v402 = vld [vmem:[#allocation8 + $0xb0] sm:$0xff]
    %v403 = vld [vmem:[#allocation8 + $0xb8] sm:$0xff]
    %v404 = vld [vmem:[#allocation8 + $0xc0] sm:$0xff]
    %v405 = vld [vmem:[#allocation8 + $0xc8] sm:$0xff]
    %v406 = vld [vmem:[#allocation8 + $0xd0] sm:$0xff]
    %v407 = vld [vmem:[#allocation8 + $0xd8] sm:$0xff]
    %v408 = vld [vmem:[#allocation8 + $0xe0] sm:$0xff]
    %v409 = vld [vmem:[#allocation8 + $0xe8] sm:$0xff]
    %v410 = vld [vmem:[#allocation8 + $0xf0] sm:$0xff]
    %v411 = vld [vmem:[#allocation8 + $0xf8] sm:$0xff]
    %v412 = vld [vmem:[#allocation8 + $0x100] sm:$0xff]
    %v413 = vld [vmem:[#allocation8 + $0x108] sm:$0xff]
    %v414 = vld [vmem:[#allocation8 + $0x110] sm:$0xff]
    %v415 = vld [vmem:[#allocation8 + $0x118] sm:$0xff]
    %v416 = vld [vmem:[#allocation8 + $0x120] sm:$0xff]
    %v417 = vld [vmem:[#allocation8 + $0x128] sm:$0xff]
    %v418 = vld [vmem:[#allocation8 + $0x130] sm:$0xff]
    %v419 = vld [vmem:[#allocation8 + $0x138] sm:$0xff]
    %v420 = vld [vmem:[#allocation8 + $0x140] sm:$0xff]
    %v421 = vld [vmem:[#allocation8 + $0x148] sm:$0xff]
    %v422 = vld [vmem:[#allocation8 + $0x150] sm:$0xff]
    %v423 = vld [vmem:[#allocation8 + $0x158] sm:$0xff]
    %v424 = vld [vmem:[#allocation8 + $0x160] sm:$0xff]
    %v425 = vld [vmem:[#allocation8 + $0x168] sm:$0xff]
    %v426 = vld [vmem:[#allocation8 + $0x170] sm:$0xff]
    %v427 = vld [vmem:[#allocation8 + $0x178] sm:$0xff]
    %v428 = vld [vmem:[#allocation8 + $0x180] sm:$0xff]
    %v429 = vld [vmem:[#allocation8 + $0x188] sm:$0xff]
    %v430 = vld [vmem:[#allocation8 + $0x190] sm:$0xff]
    %v431 = vld [vmem:[#allocation8 + $0x198] sm:$0xff]
    %v432 = vld [vmem:[#allocation8 + $0x1a0] sm:$0xff]
    %v433 = vld [vmem:[#allocation8 + $0x1a8] sm:$0xff]
    %v434 = vld [vmem:[#allocation8 + $0x1b0] sm:$0xff]
    %v435 = vld [vmem:[#allocation8 + $0x1b8] sm:$0xff]
    %v436 = vld [vmem:[#allocation8 + $0x1c0] sm:$0xff]
    %v437 = vld [vmem:[#allocation8 + $0x1c8] sm:$0xff]
    %v438 = vld [vmem:[#allocation8 + $0x1d0] sm:$0xff]
    %v439 = vld [vmem:[#allocation8 + $0x1d8] sm:$0xff]
    %v440 = vld [vmem:[#allocation8 + $0x1e0] sm:$0xff]
    %v441 = vld [vmem:[#allocation8 + $0x1e8] sm:$0xff]
    %v442 = vld [vmem:[#allocation8 + $0x1f0] sm:$0xff]
    %v443 = vld [vmem:[#allocation8 + $0x1f8] sm:$0xff]
    %v444 = vld [vmem:[#allocation8 + $0x200] sm:$0xff]
    %v445 = vld [vmem:[#allocation8 + $0x208] sm:$0xff]
    %v446 = vld [vmem:[#allocation8 + $0x210] sm:$0xff]
    %v447 = vld [vmem:[#allocation8 + $0x218] sm:$0xff]
    %v448 = vld [vmem:[#allocation8 + $0x220] sm:$0xff]
    %v449 = vld [vmem:[#allocation8 + $0x228] sm:$0xff]
    %v450 = vld [vmem:[#allocation8 + $0x230] sm:$0xff]
    %v451 = vld [vmem:[#allocation8 + $0x238] sm:$0xff]
    %v452 = vld [vmem:[#allocation8 + $0x240] sm:$0xff]
    %v453 = vld [vmem:[#allocation8 + $0x248] sm:$0xff]
    %v454 = vld [vmem:[#allocation8 + $0x250] sm:$0xff]
    %v455 = vld [vmem:[#allocation8 + $0x258] sm:$0xff]
    %v456 = vld [vmem:[#allocation8 + $0x260] sm:$0xff]
    %v457 = vld [vmem:[#allocation8 + $0x268] sm:$0xff]
    %v458 = vld [vmem:[#allocation8 + $0x270] sm:$0xff]
    %v459 = vld [vmem:[#allocation8 + $0x278] sm:$0xff]
    %v460 = vld [vmem:[#allocation8 + $0x280] sm:$0xff]
    %v461 = vld [vmem:[#allocation8 + $0x288] sm:$0xff]
    %v462 = vld [vmem:[#allocation8 + $0x290] sm:$0xff]
    %v463 = vld [vmem:[#allocation8 + $0x298] sm:$0xff]
    %v464 = vld [vmem:[#allocation8 + $0x2a0] sm:$0xff]
    %v465 = vld [vmem:[#allocation8 + $0x2a8] sm:$0xff]
    %v466 = vld [vmem:[#allocation8 + $0x2b0] sm:$0xff]
    %v467 = vld [vmem:[#allocation8 + $0x2b8] sm:$0xff]
    %v468 = vld [vmem:[#allocation8 + $0x2c0] sm:$0xff]
    %v469 = vld [vmem:[#allocation8 + $0x2c8] sm:$0xff]
    %v470 = vld [vmem:[#allocation8 + $0x2d0] sm:$0xff]
    %v471 = vld [vmem:[#allocation8 + $0x2d8] sm:$0xff]
    %v472 = vld [vmem:[#allocation8 + $0x2e0] sm:$0xff]
    %v473 = vld [vmem:[#allocation8 + $0x2e8] sm:$0xff]
    %v474 = vld [vmem:[#allocation8 + $0x2f0] sm:$0xff]
    %v475 = vld [vmem:[#allocation8 + $0x2f8] sm:$0xff]
    %v476 = vld [vmem:[#allocation8 + $0x300] sm:$0xff]
    %v477 = vld [vmem:[#allocation8 + $0x308] sm:$0xff]
    %v478 = vld [vmem:[#allocation8 + $0x310] sm:$0xff]
    %v479 = vld [vmem:[#allocation8 + $0x318] sm:$0xff]
    %v480 = vld [vmem:[#allocation8 + $0x320] sm:$0xff]
    %v481 = vld [vmem:[#allocation8 + $0x328] sm:$0xff]
    %v482 = vld [vmem:[#allocation8 + $0x330] sm:$0xff]
    %v483 = vld [vmem:[#allocation8 + $0x338] sm:$0xff]
    %v484 = vld [vmem:[#allocation8 + $0x340] sm:$0xff]
    %v485 = vld [vmem:[#allocation8 + $0x348] sm:$0xff]
    %v486 = vld [vmem:[#allocation8 + $0x350] sm:$0xff]
    %v487 = vld [vmem:[#allocation8 + $0x358] sm:$0xff]
    %v488 = vld [vmem:[#allocation8 + $0x360] sm:$0xff]
    %v489 = vld [vmem:[#allocation8 + $0x368] sm:$0xff]
    %v490 = vld [vmem:[#allocation8 + $0x370] sm:$0xff]
    %v491 = vld [vmem:[#allocation8 + $0x378] sm:$0xff]
    %v492 = vld [vmem:[#allocation8 + $0x380] sm:$0xff]
    %v493 = vld [vmem:[#allocation8 + $0x388] sm:$0xff]
    %v494 = vld [vmem:[#allocation8 + $0x390] sm:$0xff]
    %v495 = vld [vmem:[#allocation8 + $0x398] sm:$0xff]
    %v496 = vld [vmem:[#allocation8 + $0x3a0] sm:$0xff]
    %v497 = vld [vmem:[#allocation8 + $0x3a8] sm:$0xff]
    %v498 = vld [vmem:[#allocation8 + $0x3b0] sm:$0xff]
    %v499 = vld [vmem:[#allocation8 + $0x3b8] sm:$0xff]
    %v500 = vld [vmem:[#allocation8 + $0x3c0] sm:$0xff]
    %v501 = vld [vmem:[#allocation8 + $0x3c8] sm:$0xff]
    %v502 = vld [vmem:[#allocation8 + $0x3d0] sm:$0xff]
    %v503 = vld [vmem:[#allocation8 + $0x3d8] sm:$0xff]
    %v504 = vld [vmem:[#allocation8 + $0x3e0] sm:$0xff]
    %v505 = vld [vmem:[#allocation8 + $0x3e8] sm:$0xff]
    %v506 = vld [vmem:[#allocation8 + $0x3f0] sm:$0xff]
    %v507 = vld [vmem:[#allocation8 + $0x3f8] sm:$0xff]
    %v508 = vld [vmem:[#allocation8 + $0x400] sm:$0xff]
    %v509 = vld [vmem:[#allocation8 + $0x408] sm:$0xff]
    %v510 = vld [vmem:[#allocation8 + $0x410] sm:$0xff]
    %v511 = vld [vmem:[#allocation8 + $0x418] sm:$0xff]
    %v512 = vld [vmem:[#allocation8 + $0x420] sm:$0xff]
    %v513 = vld [vmem:[#allocation8 + $0x428] sm:$0xff]
    %v514 = vld [vmem:[#allocation8 + $0x430] sm:$0xff]
    %v515 = vld [vmem:[#allocation8 + $0x438] sm:$0xff]
    %v516 = vld [vmem:[#allocation8 + $0x440] sm:$0xff]
    %v517 = vld [vmem:[#allocation8 + $0x448] sm:$0xff]
    %v518 = vld [vmem:[#allocation8 + $0x450] sm:$0xff]
    %v519 = vld [vmem:[#allocation8 + $0x458] sm:$0xff]
    %v520 = vld [vmem:[#allocation8 + $0x460] sm:$0xff]
    %v521 = vld [vmem:[#allocation8 + $0x468] sm:$0xff]
    %v522 = vld [vmem:[#allocation8 + $0x470] sm:$0xff]
    %v523 = vld [vmem:[#allocation8 + $0x478] sm:$0xff]
    %v524 = vld [vmem:[#allocation8 + $0x480] sm:$0xff]
    %v525 = vld [vmem:[#allocation8 + $0x488] sm:$0xff]
    %v526 = vld [vmem:[#allocation8 + $0x490] sm:$0xff]
    %v527 = vld [vmem:[#allocation8 + $0x498] sm:$0xff]
    %v528 = vld [vmem:[#allocation8 + $0x4a0] sm:$0xff]
    %v529 = vld [vmem:[#allocation8 + $0x4a8] sm:$0xff]
    %v530 = vld [vmem:[#allocation8 + $0x4b0] sm:$0xff]
    %v531 = vld [vmem:[#allocation8 + $0x4b8] sm:$0xff]
    %v532 = vld [vmem:[#allocation8 + $0x4c0] sm:$0xff]
    %v533 = vld [vmem:[#allocation8 + $0x4c8] sm:$0xff]
    %v534 = vld [vmem:[#allocation8 + $0x4d0] sm:$0xff]
    %v535 = vld [vmem:[#allocation8 + $0x4d8] sm:$0xff]
    %v536 = vld [vmem:[#allocation8 + $0x4e0] sm:$0xff]
    %v537 = vld [vmem:[#allocation8 + $0x4e8] sm:$0xff]
    %v538 = vld [vmem:[#allocation8 + $0x4f0] sm:$0xff]
    %v539 = vld [vmem:[#allocation8 + $0x4f8] sm:$0xff]
    %v540 = vld [vmem:[#allocation8 + $0x500] sm:$0xff]
    %v541 = vld [vmem:[#allocation8 + $0x508] sm:$0xff]
    %v542 = vld [vmem:[#allocation8 + $0x510] sm:$0xff]
    %v543 = vld [vmem:[#allocation8 + $0x518] sm:$0xff]
    %v544 = vld [vmem:[#allocation8 + $0x520] sm:$0xff]
    %v545 = vld [vmem:[#allocation8 + $0x528] sm:$0xff]
    %v546 = vld [vmem:[#allocation8 + $0x530] sm:$0xff]
    %v547 = vld [vmem:[#allocation8 + $0x538] sm:$0xff]
    %v548 = vld [vmem:[#allocation8 + $0x540] sm:$0xff]
    %v549 = vld [vmem:[#allocation8 + $0x548] sm:$0xff]
    %v550 = vld [vmem:[#allocation8 + $0x550] sm:$0xff]
    %v551 = vld [vmem:[#allocation8 + $0x558] sm:$0xff]
    %v552 = vld [vmem:[#allocation8 + $0x560] sm:$0xff]
    %v553 = vld [vmem:[#allocation8 + $0x568] sm:$0xff]
    %v554 = vld [vmem:[#allocation8 + $0x570] sm:$0xff]
    %v555 = vld [vmem:[#allocation8 + $0x578] sm:$0xff]
    %v556 = vld [vmem:[#allocation8 + $0x580] sm:$0xff]
    %v557 = vld [vmem:[#allocation8 + $0x588] sm:$0xff]
    %v558 = vld [vmem:[#allocation8 + $0x590] sm:$0xff]
    %v559 = vld [vmem:[#allocation8 + $0x598] sm:$0xff]
    %v560 = vld [vmem:[#allocation8 + $0x5a0] sm:$0xff]
    %v561 = vld [vmem:[#allocation8 + $0x5a8] sm:$0xff]
    %v562 = vld [vmem:[#allocation8 + $0x5b0] sm:$0xff]
    %v563 = vld [vmem:[#allocation8 + $0x5b8] sm:$0xff]
    %v564 = vld [vmem:[#allocation8 + $0x5c0] sm:$0xff]
    %v565 = vld [vmem:[#allocation8 + $0x5c8] sm:$0xff]
    %v566 = vld [vmem:[#allocation8 + $0x5d0] sm:$0xff]
    %v567 = vld [vmem:[#allocation8 + $0x5d8] sm:$0xff]
    %v568 = vld [vmem:[#allocation8 + $0x5e0] sm:$0xff]
    %v569 = vld [vmem:[#allocation8 + $0x5e8] sm:$0xff]
    %v570 = vld [vmem:[#allocation8 + $0x5f0] sm:$0xff]
    %v571 = vld [vmem:[#allocation8 + $0x5f8] sm:$0xff]
    %v572 = vld [vmem:[#allocation8 + $0x600] sm:$0xff]
    %v573 = vld [vmem:[#allocation8 + $0x608] sm:$0xff]
    %v574 = vld [vmem:[#allocation8 + $0x610] sm:$0xff]
    %v575 = vld [vmem:[#allocation8 + $0x618] sm:$0xff]
    %v576 = vld [vmem:[#allocation8 + $0x620] sm:$0xff]
    %v577 = vld [vmem:[#allocation8 + $0x628] sm:$0xff]
    %v578 = vld [vmem:[#allocation8 + $0x630] sm:$0xff]
    %v579 = vld [vmem:[#allocation8 + $0x638] sm:$0xff]
    %v580 = vld [vmem:[#allocation8 + $0x640] sm:$0xff]
    %v581 = vld [vmem:[#allocation8 + $0x648] sm:$0xff]
    %v582 = vld [vmem:[#allocation8 + $0x650] sm:$0xff]
    %v583 = vld [vmem:[#allocation8 + $0x658] sm:$0xff]
    %v584 = vld [vmem:[#allocation8 + $0x660] sm:$0xff]
    %v585 = vld [vmem:[#allocation8 + $0x668] sm:$0xff]
    %v586 = vld [vmem:[#allocation8 + $0x670] sm:$0xff]
    %v587 = vld [vmem:[#allocation8 + $0x678] sm:$0xff]
    %v588 = vld [vmem:[#allocation8 + $0x680] sm:$0xff]
    %v589 = vld [vmem:[#allocation8 + $0x688] sm:$0xff]
    %v590 = vld [vmem:[#allocation8 + $0x690] sm:$0xff]
    %v591 = vld [vmem:[#allocation8 + $0x698] sm:$0xff]
    %v592 = vld [vmem:[#allocation8 + $0x6a0] sm:$0xff]
    %v593 = vld [vmem:[#allocation8 + $0x6a8] sm:$0xff]
    %v594 = vld [vmem:[#allocation8 + $0x6b0] sm:$0xff]
    %v595 = vld [vmem:[#allocation8 + $0x6b8] sm:$0xff]
    %v596 = vld [vmem:[#allocation8 + $0x6c0] sm:$0xff]
    %v597 = vld [vmem:[#allocation8 + $0x6c8] sm:$0xff]
    %v598 = vld [vmem:[#allocation8 + $0x6d0] sm:$0xff]
    %v599 = vld [vmem:[#allocation8 + $0x6d8] sm:$0xff]
    %v600 = vld [vmem:[#allocation8 + $0x6e0] sm:$0xff]
    %v601 = vld [vmem:[#allocation8 + $0x6e8] sm:$0xff]
    %v602 = vld [vmem:[#allocation8 + $0x6f0] sm:$0xff]
    %v603 = vld [vmem:[#allocation8 + $0x6f8] sm:$0xff]
    %v604 = vld [vmem:[#allocation8 + $0x700] sm:$0xff]
    %v605 = vld [vmem:[#allocation8 + $0x708] sm:$0xff]
    %v606 = vld [vmem:[#allocation8 + $0x710] sm:$0xff]
    %v607 = vld [vmem:[#allocation8 + $0x718] sm:$0xff]
    %v608 = vld [vmem:[#allocation8 + $0x720] sm:$0xff]
    %v609 = vld [vmem:[#allocation8 + $0x728] sm:$0xff]
    %v610 = vld [vmem:[#allocation8 + $0x730] sm:$0xff]
    %v611 = vld [vmem:[#allocation8 + $0x738] sm:$0xff]
    %v612 = vld [vmem:[#allocation8 + $0x740] sm:$0xff]
    %v613 = vld [vmem:[#allocation8 + $0x748] sm:$0xff]
    %v614 = vld [vmem:[#allocation8 + $0x750] sm:$0xff]
    %v615 = vld [vmem:[#allocation8 + $0x758] sm:$0xff]
    %v616 = vld [vmem:[#allocation8 + $0x760] sm:$0xff]
    %v617 = vld [vmem:[#allocation8 + $0x768] sm:$0xff]
    %v618 = vld [vmem:[#allocation8 + $0x770] sm:$0xff]
    %v619 = vld [vmem:[#allocation8 + $0x778] sm:$0xff]
    %v620 = vld [vmem:[#allocation8 + $0x780] sm:$0xff]
    %v621 = vld [vmem:[#allocation8 + $0x788] sm:$0xff]
    %v622 = vld [vmem:[#allocation8 + $0x790] sm:$0xff]
    %v623 = vld [vmem:[#allocation8 + $0x798] sm:$0xff]
    %v624 = vld [vmem:[#allocation8 + $0x7a0] sm:$0xff]
    %v625 = vld [vmem:[#allocation8 + $0x7a8] sm:$0xff]
    %v626 = vld [vmem:[#allocation8 + $0x7b0] sm:$0xff]
    %v627 = vld [vmem:[#allocation8 + $0x7b8] sm:$0xff]
    %v628 = vld [vmem:[#allocation8 + $0x7c0] sm:$0xff]
    %v629 = vld [vmem:[#allocation8 + $0x7c8] sm:$0xff]
    %v630 = vld [vmem:[#allocation8 + $0x7d0] sm:$0xff]
    %v631 = vld [vmem:[#allocation8 + $0x7d8] sm:$0xff]
    %v632 = vld [vmem:[#allocation8 + $0x7e0] sm:$0xff]
    %v633 = vld [vmem:[#allocation8 + $0x7e8] sm:$0xff]
    %v634 = vld [vmem:[#allocation8 + $0x7f0] sm:$0xff]
    %v635 = vld [vmem:[#allocation8 + $0x7f8] sm:$0xff]
    %v636 = vld [vmem:[%s4] sm:$0xf]
    %v638 = vlaneseq
    %v639 = vshrl.u32 %v638, 7
    %v640 = vsub.s32 0, %v639
    %v641 = vrot.slane %v636, %v640
    %v642 = vlaneseq
    %v643 = vshrl.u32 %v642, 7
    %v644 = vsub.s32 1, %v643
    %v645 = vrot.slane %v636, %v644
    %v646 = vlaneseq
    %v647 = vshrl.u32 %v646, 7
    %v648 = vsub.s32 2, %v647
    %v649 = vrot.slane %v636, %v648
    %v650 = vlaneseq
    %v651 = vshrl.u32 %v650, 7
    %v652 = vsub.s32 3, %v651
    %v653 = vrot.slane %v636, %v652
    %v914 = vunpack.c.l.b16 %v380
    %v915 = vunpack.c.h.b16 %v380
    %v916 = vunpack.c.l.b16 %v381
    %v917 = vunpack.c.h.b16 %v381
    %v918 = vunpack.c.l.b16 %v382
    %v919 = vunpack.c.h.b16 %v382
    %v920 = vunpack.c.l.b16 %v383
    %v921 = vunpack.c.h.b16 %v383
    %v922 = vunpack.c.l.b16 %v384
    %v923 = vunpack.c.h.b16 %v384
    %v924 = vunpack.c.l.b16 %v385
    %v925 = vunpack.c.h.b16 %v385
    %v926 = vunpack.c.l.b16 %v386
    %v927 = vunpack.c.h.b16 %v386
    %v928 = vunpack.c.l.b16 %v387
    %v929 = vunpack.c.h.b16 %v387
    %v930 = vunpack.c.l.b16 %v388
    %v931 = vunpack.c.h.b16 %v388
    %v932 = vunpack.c.l.b16 %v389
    %v933 = vunpack.c.h.b16 %v389
    %v934 = vunpack.c.l.b16 %v390
    %v935 = vunpack.c.h.b16 %v390
    %v936 = vunpack.c.l.b16 %v391
    %v937 = vunpack.c.h.b16 %v391
    %v938 = vunpack.c.l.b16 %v392
    %v939 = vunpack.c.h.b16 %v392
    %v940 = vunpack.c.l.b16 %v393
    %v941 = vunpack.c.h.b16 %v393
    %v942 = vunpack.c.l.b16 %v394
    %v943 = vunpack.c.h.b16 %v394
    %v944 = vunpack.c.l.b16 %v395
    %v945 = vunpack.c.h.b16 %v395
    %v946 = vunpack.c.l.b16 %v396
    %v947 = vunpack.c.h.b16 %v396
    %v948 = vunpack.c.l.b16 %v397
    %v949 = vunpack.c.h.b16 %v397
    %v950 = vunpack.c.l.b16 %v398
    %v951 = vunpack.c.h.b16 %v398
    %v952 = vunpack.c.l.b16 %v399
    %v953 = vunpack.c.h.b16 %v399
    %v954 = vunpack.c.l.b16 %v400
    %v955 = vunpack.c.h.b16 %v400
    %v956 = vunpack.c.l.b16 %v401
    %v957 = vunpack.c.h.b16 %v401
    %v958 = vunpack.c.l.b16 %v402
    %v959 = vunpack.c.h.b16 %v402
    %v960 = vunpack.c.l.b16 %v403
    %v961 = vunpack.c.h.b16 %v403
    %v962 = vunpack.c.l.b16 %v404
    %v963 = vunpack.c.h.b16 %v404
    %v964 = vunpack.c.l.b16 %v405
    %v965 = vunpack.c.h.b16 %v405
    %v966 = vunpack.c.l.b16 %v406
    %v967 = vunpack.c.h.b16 %v406
    %v968 = vunpack.c.l.b16 %v407
    %v969 = vunpack.c.h.b16 %v407
    %v970 = vunpack.c.l.b16 %v408
    %v971 = vunpack.c.h.b16 %v408
    %v972 = vunpack.c.l.b16 %v409
    %v973 = vunpack.c.h.b16 %v409
    %v974 = vunpack.c.l.b16 %v410
    %v975 = vunpack.c.h.b16 %v410
    %v976 = vunpack.c.l.b16 %v411
    %v977 = vunpack.c.h.b16 %v411
    %v978 = vunpack.c.l.b16 %v412
    %v979 = vunpack.c.h.b16 %v412
    %v980 = vunpack.c.l.b16 %v413
    %v981 = vunpack.c.h.b16 %v413
    %v982 = vunpack.c.l.b16 %v414
    %v983 = vunpack.c.h.b16 %v414
    %v984 = vunpack.c.l.b16 %v415
    %v985 = vunpack.c.h.b16 %v415
    %v986 = vunpack.c.l.b16 %v416
    %v987 = vunpack.c.h.b16 %v416
    %v988 = vunpack.c.l.b16 %v417
    %v989 = vunpack.c.h.b16 %v417
    %v990 = vunpack.c.l.b16 %v418
    %v991 = vunpack.c.h.b16 %v418
    %v992 = vunpack.c.l.b16 %v419
    %v993 = vunpack.c.h.b16 %v419
    %v994 = vunpack.c.l.b16 %v420
    %v995 = vunpack.c.h.b16 %v420
    %v996 = vunpack.c.l.b16 %v421
    %v997 = vunpack.c.h.b16 %v421
    %v998 = vunpack.c.l.b16 %v422
    %v999 = vunpack.c.h.b16 %v422
    %v1000 = vunpack.c.l.b16 %v423
    %v1001 = vunpack.c.h.b16 %v423
    %v1002 = vunpack.c.l.b16 %v424
    %v1003 = vunpack.c.h.b16 %v424
    %v1004 = vunpack.c.l.b16 %v425
    %v1005 = vunpack.c.h.b16 %v425
    %v1006 = vunpack.c.l.b16 %v426
    %v1007 = vunpack.c.h.b16 %v426
    %v1008 = vunpack.c.l.b16 %v427
    %v1009 = vunpack.c.h.b16 %v427
    %v1010 = vunpack.c.l.b16 %v428
    %v1011 = vunpack.c.h.b16 %v428
    %v1012 = vunpack.c.l.b16 %v429
    %v1013 = vunpack.c.h.b16 %v429
    %v1014 = vunpack.c.l.b16 %v430
    %v1015 = vunpack.c.h.b16 %v430
    %v1016 = vunpack.c.l.b16 %v431
    %v1017 = vunpack.c.h.b16 %v431
    %v1018 = vunpack.c.l.b16 %v432
    %v1019 = vunpack.c.h.b16 %v432
    %v1020 = vunpack.c.l.b16 %v433
    %v1021 = vunpack.c.h.b16 %v433
    %v1022 = vunpack.c.l.b16 %v434
    %v1023 = vunpack.c.h.b16 %v434
    %v1024 = vunpack.c.l.b16 %v435
    %v1025 = vunpack.c.h.b16 %v435
    %v1026 = vunpack.c.l.b16 %v436
    %v1027 = vunpack.c.h.b16 %v436
    %v1028 = vunpack.c.l.b16 %v437
    %v1029 = vunpack.c.h.b16 %v437
    %v1030 = vunpack.c.l.b16 %v438
    %v1031 = vunpack.c.h.b16 %v438
    %v1032 = vunpack.c.l.b16 %v439
    %v1033 = vunpack.c.h.b16 %v439
    %v1034 = vunpack.c.l.b16 %v440
    %v1035 = vunpack.c.h.b16 %v440
    %v1036 = vunpack.c.l.b16 %v441
    %v1037 = vunpack.c.h.b16 %v441
    %v1038 = vunpack.c.l.b16 %v442
    %v1039 = vunpack.c.h.b16 %v442
    %v1040 = vunpack.c.l.b16 %v443
    %v1041 = vunpack.c.h.b16 %v443
    %v1042 = vunpack.c.l.b16 %v444
    %v1043 = vunpack.c.h.b16 %v444
    %v1044 = vunpack.c.l.b16 %v445
    %v1045 = vunpack.c.h.b16 %v445
    %v1046 = vunpack.c.l.b16 %v446
    %v1047 = vunpack.c.h.b16 %v446
    %v1048 = vunpack.c.l.b16 %v447
    %v1049 = vunpack.c.h.b16 %v447
    %v1050 = vunpack.c.l.b16 %v448
    %v1051 = vunpack.c.h.b16 %v448
    %v1052 = vunpack.c.l.b16 %v449
    %v1053 = vunpack.c.h.b16 %v449
    %v1054 = vunpack.c.l.b16 %v450
    %v1055 = vunpack.c.h.b16 %v450
    %v1056 = vunpack.c.l.b16 %v451
    %v1057 = vunpack.c.h.b16 %v451
    %v1058 = vunpack.c.l.b16 %v452
    %v1059 = vunpack.c.h.b16 %v452
    %v1060 = vunpack.c.l.b16 %v453
    %v1061 = vunpack.c.h.b16 %v453
    %v1062 = vunpack.c.l.b16 %v454
    %v1063 = vunpack.c.h.b16 %v454
    %v1064 = vunpack.c.l.b16 %v455
    %v1065 = vunpack.c.h.b16 %v455
    %v1066 = vunpack.c.l.b16 %v456
    %v1067 = vunpack.c.h.b16 %v456
    %v1068 = vunpack.c.l.b16 %v457
    %v1069 = vunpack.c.h.b16 %v457
    %v1070 = vunpack.c.l.b16 %v458
    %v1071 = vunpack.c.h.b16 %v458
    %v1072 = vunpack.c.l.b16 %v459
    %v1073 = vunpack.c.h.b16 %v459
    %v1074 = vunpack.c.l.b16 %v460
    %v1075 = vunpack.c.h.b16 %v460
    %v1076 = vunpack.c.l.b16 %v461
    %v1077 = vunpack.c.h.b16 %v461
    %v1078 = vunpack.c.l.b16 %v462
    %v1079 = vunpack.c.h.b16 %v462
    %v1080 = vunpack.c.l.b16 %v463
    %v1081 = vunpack.c.h.b16 %v463
    %v1082 = vunpack.c.l.b16 %v464
    %v1083 = vunpack.c.h.b16 %v464
    %v1084 = vunpack.c.l.b16 %v465
    %v1085 = vunpack.c.h.b16 %v465
    %v1086 = vunpack.c.l.b16 %v466
    %v1087 = vunpack.c.h.b16 %v466
    %v1088 = vunpack.c.l.b16 %v467
    %v1089 = vunpack.c.h.b16 %v467
    %v1090 = vunpack.c.l.b16 %v468
    %v1091 = vunpack.c.h.b16 %v468
    %v1092 = vunpack.c.l.b16 %v469
    %v1093 = vunpack.c.h.b16 %v469
    %v1094 = vunpack.c.l.b16 %v470
    %v1095 = vunpack.c.h.b16 %v470
    %v1096 = vunpack.c.l.b16 %v471
    %v1097 = vunpack.c.h.b16 %v471
    %v1098 = vunpack.c.l.b16 %v472
    %v1099 = vunpack.c.h.b16 %v472
    %v1100 = vunpack.c.l.b16 %v473
    %v1101 = vunpack.c.h.b16 %v473
    %v1102 = vunpack.c.l.b16 %v474
    %v1103 = vunpack.c.h.b16 %v474
    %v1104 = vunpack.c.l.b16 %v475
    %v1105 = vunpack.c.h.b16 %v475
    %v1106 = vunpack.c.l.b16 %v476
    %v1107 = vunpack.c.h.b16 %v476
    %v1108 = vunpack.c.l.b16 %v477
    %v1109 = vunpack.c.h.b16 %v477
    %v1110 = vunpack.c.l.b16 %v478
    %v1111 = vunpack.c.h.b16 %v478
    %v1112 = vunpack.c.l.b16 %v479
    %v1113 = vunpack.c.h.b16 %v479
    %v1114 = vunpack.c.l.b16 %v480
    %v1115 = vunpack.c.h.b16 %v480
    %v1116 = vunpack.c.l.b16 %v481
    %v1117 = vunpack.c.h.b16 %v481
    %v1118 = vunpack.c.l.b16 %v482
    %v1119 = vunpack.c.h.b16 %v482
    %v1120 = vunpack.c.l.b16 %v483
    %v1121 = vunpack.c.h.b16 %v483
    %v1122 = vunpack.c.l.b16 %v484
    %v1123 = vunpack.c.h.b16 %v484
    %v1124 = vunpack.c.l.b16 %v485
    %v1125 = vunpack.c.h.b16 %v485
    %v1126 = vunpack.c.l.b16 %v486
    %v1127 = vunpack.c.h.b16 %v486
    %v1128 = vunpack.c.l.b16 %v487
    %v1129 = vunpack.c.h.b16 %v487
    %v1130 = vunpack.c.l.b16 %v488
    %v1131 = vunpack.c.h.b16 %v488
    %v1132 = vunpack.c.l.b16 %v489
    %v1133 = vunpack.c.h.b16 %v489
    %v1134 = vunpack.c.l.b16 %v490
    %v1135 = vunpack.c.h.b16 %v490
    %v1136 = vunpack.c.l.b16 %v491
    %v1137 = vunpack.c.h.b16 %v491
    %v1138 = vunpack.c.l.b16 %v492
    %v1139 = vunpack.c.h.b16 %v492
    %v1140 = vunpack.c.l.b16 %v493
    %v1141 = vunpack.c.h.b16 %v493
    %v1142 = vunpack.c.l.b16 %v494
    %v1143 = vunpack.c.h.b16 %v494
    %v1144 = vunpack.c.l.b16 %v495
    %v1145 = vunpack.c.h.b16 %v495
    %v1146 = vunpack.c.l.b16 %v496
    %v1147 = vunpack.c.h.b16 %v496
    %v1148 = vunpack.c.l.b16 %v497
    %v1149 = vunpack.c.h.b16 %v497
    %v1150 = vunpack.c.l.b16 %v498
    %v1151 = vunpack.c.h.b16 %v498
    %v1152 = vunpack.c.l.b16 %v499
    %v1153 = vunpack.c.h.b16 %v499
    %v1154 = vunpack.c.l.b16 %v500
    %v1155 = vunpack.c.h.b16 %v500
    %v1156 = vunpack.c.l.b16 %v501
    %v1157 = vunpack.c.h.b16 %v501
    %v1158 = vunpack.c.l.b16 %v502
    %v1159 = vunpack.c.h.b16 %v502
    %v1160 = vunpack.c.l.b16 %v503
    %v1161 = vunpack.c.h.b16 %v503
    %v1162 = vunpack.c.l.b16 %v504
    %v1163 = vunpack.c.h.b16 %v504
    %v1164 = vunpack.c.l.b16 %v505
    %v1165 = vunpack.c.h.b16 %v505
    %v1166 = vunpack.c.l.b16 %v506
    %v1167 = vunpack.c.h.b16 %v506
    %v1168 = vunpack.c.l.b16 %v507
    %v1169 = vunpack.c.h.b16 %v507
    %v1170 = vunpack.c.l.b16 %v508
    %v1171 = vunpack.c.h.b16 %v508
    %v1172 = vunpack.c.l.b16 %v509
    %v1173 = vunpack.c.h.b16 %v509
    %v1174 = vunpack.c.l.b16 %v510
    %v1175 = vunpack.c.h.b16 %v510
    %v1176 = vunpack.c.l.b16 %v511
    %v1177 = vunpack.c.h.b16 %v511
    %v1178 = vunpack.c.l.b16 %v512
    %v1179 = vunpack.c.h.b16 %v512
    %v1180 = vunpack.c.l.b16 %v513
    %v1181 = vunpack.c.h.b16 %v513
    %v1182 = vunpack.c.l.b16 %v514
    %v1183 = vunpack.c.h.b16 %v514
    %v1184 = vunpack.c.l.b16 %v515
    %v1185 = vunpack.c.h.b16 %v515
    %v1186 = vunpack.c.l.b16 %v516
    %v1187 = vunpack.c.h.b16 %v516
    %v1188 = vunpack.c.l.b16 %v517
    %v1189 = vunpack.c.h.b16 %v517
    %v1190 = vunpack.c.l.b16 %v518
    %v1191 = vunpack.c.h.b16 %v518
    %v1192 = vunpack.c.l.b16 %v519
    %v1193 = vunpack.c.h.b16 %v519
    %v1194 = vunpack.c.l.b16 %v520
    %v1195 = vunpack.c.h.b16 %v520
    %v1196 = vunpack.c.l.b16 %v521
    %v1197 = vunpack.c.h.b16 %v521
    %v1198 = vunpack.c.l.b16 %v522
    %v1199 = vunpack.c.h.b16 %v522
    %v1200 = vunpack.c.l.b16 %v523
    %v1201 = vunpack.c.h.b16 %v523
    %v1202 = vunpack.c.l.b16 %v524
    %v1203 = vunpack.c.h.b16 %v524
    %v1204 = vunpack.c.l.b16 %v525
    %v1205 = vunpack.c.h.b16 %v525
    %v1206 = vunpack.c.l.b16 %v526
    %v1207 = vunpack.c.h.b16 %v526
    %v1208 = vunpack.c.l.b16 %v527
    %v1209 = vunpack.c.h.b16 %v527
    %v1210 = vunpack.c.l.b16 %v528
    %v1211 = vunpack.c.h.b16 %v528
    %v1212 = vunpack.c.l.b16 %v529
    %v1213 = vunpack.c.h.b16 %v529
    %v1214 = vunpack.c.l.b16 %v530
    %v1215 = vunpack.c.h.b16 %v530
    %v1216 = vunpack.c.l.b16 %v531
    %v1217 = vunpack.c.h.b16 %v531
    %v1218 = vunpack.c.l.b16 %v532
    %v1219 = vunpack.c.h.b16 %v532
    %v1220 = vunpack.c.l.b16 %v533
    %v1221 = vunpack.c.h.b16 %v533
    %v1222 = vunpack.c.l.b16 %v534
    %v1223 = vunpack.c.h.b16 %v534
    %v1224 = vunpack.c.l.b16 %v535
    %v1225 = vunpack.c.h.b16 %v535
    %v1226 = vunpack.c.l.b16 %v536
    %v1227 = vunpack.c.h.b16 %v536
    %v1228 = vunpack.c.l.b16 %v537
    %v1229 = vunpack.c.h.b16 %v537
    %v1230 = vunpack.c.l.b16 %v538
    %v1231 = vunpack.c.h.b16 %v538
    %v1232 = vunpack.c.l.b16 %v539
    %v1233 = vunpack.c.h.b16 %v539
    %v1234 = vunpack.c.l.b16 %v540
    %v1235 = vunpack.c.h.b16 %v540
    %v1236 = vunpack.c.l.b16 %v541
    %v1237 = vunpack.c.h.b16 %v541
    %v1238 = vunpack.c.l.b16 %v542
    %v1239 = vunpack.c.h.b16 %v542
    %v1240 = vunpack.c.l.b16 %v543
    %v1241 = vunpack.c.h.b16 %v543
    %v1242 = vunpack.c.l.b16 %v544
    %v1243 = vunpack.c.h.b16 %v544
    %v1244 = vunpack.c.l.b16 %v545
    %v1245 = vunpack.c.h.b16 %v545
    %v1246 = vunpack.c.l.b16 %v546
    %v1247 = vunpack.c.h.b16 %v546
    %v1248 = vunpack.c.l.b16 %v547
    %v1249 = vunpack.c.h.b16 %v547
    %v1250 = vunpack.c.l.b16 %v548
    %v1251 = vunpack.c.h.b16 %v548
    %v1252 = vunpack.c.l.b16 %v549
    %v1253 = vunpack.c.h.b16 %v549
    %v1254 = vunpack.c.l.b16 %v550
    %v1255 = vunpack.c.h.b16 %v550
    %v1256 = vunpack.c.l.b16 %v551
    %v1257 = vunpack.c.h.b16 %v551
    %v1258 = vunpack.c.l.b16 %v552
    %v1259 = vunpack.c.h.b16 %v552
    %v1260 = vunpack.c.l.b16 %v553
    %v1261 = vunpack.c.h.b16 %v553
    %v1262 = vunpack.c.l.b16 %v554
    %v1263 = vunpack.c.h.b16 %v554
    %v1264 = vunpack.c.l.b16 %v555
    %v1265 = vunpack.c.h.b16 %v555
    %v1266 = vunpack.c.l.b16 %v556
    %v1267 = vunpack.c.h.b16 %v556
    %v1268 = vunpack.c.l.b16 %v557
    %v1269 = vunpack.c.h.b16 %v557
    %v1270 = vunpack.c.l.b16 %v558
    %v1271 = vunpack.c.h.b16 %v558
    %v1272 = vunpack.c.l.b16 %v559
    %v1273 = vunpack.c.h.b16 %v559
    %v1274 = vunpack.c.l.b16 %v560
    %v1275 = vunpack.c.h.b16 %v560
    %v1276 = vunpack.c.l.b16 %v561
    %v1277 = vunpack.c.h.b16 %v561
    %v1278 = vunpack.c.l.b16 %v562
    %v1279 = vunpack.c.h.b16 %v562
    %v1280 = vunpack.c.l.b16 %v563
    %v1281 = vunpack.c.h.b16 %v563
    %v1282 = vunpack.c.l.b16 %v564
    %v1283 = vunpack.c.h.b16 %v564
    %v1284 = vunpack.c.l.b16 %v565
    %v1285 = vunpack.c.h.b16 %v565
    %v1286 = vunpack.c.l.b16 %v566
    %v1287 = vunpack.c.h.b16 %v566
    %v1288 = vunpack.c.l.b16 %v567
    %v1289 = vunpack.c.h.b16 %v567
    %v1290 = vunpack.c.l.b16 %v568
    %v1291 = vunpack.c.h.b16 %v568
    %v1292 = vunpack.c.l.b16 %v569
    %v1293 = vunpack.c.h.b16 %v569
    %v1294 = vunpack.c.l.b16 %v570
    %v1295 = vunpack.c.h.b16 %v570
    %v1296 = vunpack.c.l.b16 %v571
    %v1297 = vunpack.c.h.b16 %v571
    %v1298 = vunpack.c.l.b16 %v572
    %v1299 = vunpack.c.h.b16 %v572
    %v1300 = vunpack.c.l.b16 %v573
    %v1301 = vunpack.c.h.b16 %v573
    %v1302 = vunpack.c.l.b16 %v574
    %v1303 = vunpack.c.h.b16 %v574
    %v1304 = vunpack.c.l.b16 %v575
    %v1305 = vunpack.c.h.b16 %v575
    %v1306 = vunpack.c.l.b16 %v576
    %v1307 = vunpack.c.h.b16 %v576
    %v1308 = vunpack.c.l.b16 %v577
    %v1309 = vunpack.c.h.b16 %v577
    %v1310 = vunpack.c.l.b16 %v578
    %v1311 = vunpack.c.h.b16 %v578
    %v1312 = vunpack.c.l.b16 %v579
    %v1313 = vunpack.c.h.b16 %v579
    %v1314 = vunpack.c.l.b16 %v580
    %v1315 = vunpack.c.h.b16 %v580
    %v1316 = vunpack.c.l.b16 %v581
    %v1317 = vunpack.c.h.b16 %v581
    %v1318 = vunpack.c.l.b16 %v582
    %v1319 = vunpack.c.h.b16 %v582
    %v1320 = vunpack.c.l.b16 %v583
    %v1321 = vunpack.c.h.b16 %v583
    %v1322 = vunpack.c.l.b16 %v584
    %v1323 = vunpack.c.h.b16 %v584
    %v1324 = vunpack.c.l.b16 %v585
    %v1325 = vunpack.c.h.b16 %v585
    %v1326 = vunpack.c.l.b16 %v586
    %v1327 = vunpack.c.h.b16 %v586
    %v1328 = vunpack.c.l.b16 %v587
    %v1329 = vunpack.c.h.b16 %v587
    %v1330 = vunpack.c.l.b16 %v588
    %v1331 = vunpack.c.h.b16 %v588
    %v1332 = vunpack.c.l.b16 %v589
    %v1333 = vunpack.c.h.b16 %v589
    %v1334 = vunpack.c.l.b16 %v590
    %v1335 = vunpack.c.h.b16 %v590
    %v1336 = vunpack.c.l.b16 %v591
    %v1337 = vunpack.c.h.b16 %v591
    %v1338 = vunpack.c.l.b16 %v592
    %v1339 = vunpack.c.h.b16 %v592
    %v1340 = vunpack.c.l.b16 %v593
    %v1341 = vunpack.c.h.b16 %v593
    %v1342 = vunpack.c.l.b16 %v594
    %v1343 = vunpack.c.h.b16 %v594
    %v1344 = vunpack.c.l.b16 %v595
    %v1345 = vunpack.c.h.b16 %v595
    %v1346 = vunpack.c.l.b16 %v596
    %v1347 = vunpack.c.h.b16 %v596
    %v1348 = vunpack.c.l.b16 %v597
    %v1349 = vunpack.c.h.b16 %v597
    %v1350 = vunpack.c.l.b16 %v598
    %v1351 = vunpack.c.h.b16 %v598
    %v1352 = vunpack.c.l.b16 %v599
    %v1353 = vunpack.c.h.b16 %v599
    %v1354 = vunpack.c.l.b16 %v600
    %v1355 = vunpack.c.h.b16 %v600
    %v1356 = vunpack.c.l.b16 %v601
    %v1357 = vunpack.c.h.b16 %v601
    %v1358 = vunpack.c.l.b16 %v602
    %v1359 = vunpack.c.h.b16 %v602
    %v1360 = vunpack.c.l.b16 %v603
    %v1361 = vunpack.c.h.b16 %v603
    %v1362 = vunpack.c.l.b16 %v604
    %v1363 = vunpack.c.h.b16 %v604
    %v1364 = vunpack.c.l.b16 %v605
    %v1365 = vunpack.c.h.b16 %v605
    %v1366 = vunpack.c.l.b16 %v606
    %v1367 = vunpack.c.h.b16 %v606
    %v1368 = vunpack.c.l.b16 %v607
    %v1369 = vunpack.c.h.b16 %v607
    %v1370 = vunpack.c.l.b16 %v608
    %v1371 = vunpack.c.h.b16 %v608
    %v1372 = vunpack.c.l.b16 %v609
    %v1373 = vunpack.c.h.b16 %v609
    %v1374 = vunpack.c.l.b16 %v610
    %v1375 = vunpack.c.h.b16 %v610
    %v1376 = vunpack.c.l.b16 %v611
    %v1377 = vunpack.c.h.b16 %v611
    %v1378 = vunpack.c.l.b16 %v612
    %v1379 = vunpack.c.h.b16 %v612
    %v1380 = vunpack.c.l.b16 %v613
    %v1381 = vunpack.c.h.b16 %v613
    %v1382 = vunpack.c.l.b16 %v614
    %v1383 = vunpack.c.h.b16 %v614
    %v1384 = vunpack.c.l.b16 %v615
    %v1385 = vunpack.c.h.b16 %v615
    %v1386 = vunpack.c.l.b16 %v616
    %v1387 = vunpack.c.h.b16 %v616
    %v1388 = vunpack.c.l.b16 %v617
    %v1389 = vunpack.c.h.b16 %v617
    %v1390 = vunpack.c.l.b16 %v618
    %v1391 = vunpack.c.h.b16 %v618
    %v1392 = vunpack.c.l.b16 %v619
    %v1393 = vunpack.c.h.b16 %v619
    %v1394 = vunpack.c.l.b16 %v620
    %v1395 = vunpack.c.h.b16 %v620
    %v1396 = vunpack.c.l.b16 %v621
    %v1397 = vunpack.c.h.b16 %v621
    %v1398 = vunpack.c.l.b16 %v622
    %v1399 = vunpack.c.h.b16 %v622
    %v1400 = vunpack.c.l.b16 %v623
    %v1401 = vunpack.c.h.b16 %v623
    %v1402 = vunpack.c.l.b16 %v624
    %v1403 = vunpack.c.h.b16 %v624
    %v1404 = vunpack.c.l.b16 %v625
    %v1405 = vunpack.c.h.b16 %v625
    %v1406 = vunpack.c.l.b16 %v626
    %v1407 = vunpack.c.h.b16 %v626
    %v1408 = vunpack.c.l.b16 %v627
    %v1409 = vunpack.c.h.b16 %v627
    %v1410 = vunpack.c.l.b16 %v628
    %v1411 = vunpack.c.h.b16 %v628
    %v1412 = vunpack.c.l.b16 %v629
    %v1413 = vunpack.c.h.b16 %v629
    %v1414 = vunpack.c.l.b16 %v630
    %v1415 = vunpack.c.h.b16 %v630
    %v1416 = vunpack.c.l.b16 %v631
    %v1417 = vunpack.c.h.b16 %v631
    %v1418 = vunpack.c.l.b16 %v632
    %v1419 = vunpack.c.h.b16 %v632
    %v1420 = vunpack.c.l.b16 %v633
    %v1421 = vunpack.c.h.b16 %v633
    %v1422 = vunpack.c.l.b16 %v634
    %v1423 = vunpack.c.h.b16 %v634
    %v1424 = vunpack.c.l.b16 %v635
    %v1425 = vunpack.c.h.b16 %v635
    %v1426 = vpack.c.b16 %v918, %v914
    %v1427 = vpack.c.b16 %v919, %v915
    %v1428 = vpack.c.b16 %v920, %v916
    %v1429 = vpack.c.b16 %v921, %v917
    %v1430 = vpack.c.b16 %v926, %v922
    %v1431 = vpack.c.b16 %v927, %v923
    %v1432 = vpack.c.b16 %v928, %v924
    %v1433 = vpack.c.b16 %v929, %v925
    %v1434 = vpack.c.b16 %v934, %v930
    %v1435 = vpack.c.b16 %v935, %v931
    %v1436 = vpack.c.b16 %v936, %v932
    %v1437 = vpack.c.b16 %v937, %v933
    %v1438 = vpack.c.b16 %v942, %v938
    %v1439 = vpack.c.b16 %v943, %v939
    %v1440 = vpack.c.b16 %v944, %v940
    %v1441 = vpack.c.b16 %v945, %v941
    %v1442 = vpack.c.b16 %v950, %v946
    %v1443 = vpack.c.b16 %v951, %v947
    %v1444 = vpack.c.b16 %v952, %v948
    %v1445 = vpack.c.b16 %v953, %v949
    %v1446 = vpack.c.b16 %v958, %v954
    %v1447 = vpack.c.b16 %v959, %v955
    %v1448 = vpack.c.b16 %v960, %v956
    %v1449 = vpack.c.b16 %v961, %v957
    %v1450 = vpack.c.b16 %v966, %v962
    %v1451 = vpack.c.b16 %v967, %v963
    %v1452 = vpack.c.b16 %v968, %v964
    %v1453 = vpack.c.b16 %v969, %v965
    %v1454 = vpack.c.b16 %v974, %v970
    %v1455 = vpack.c.b16 %v975, %v971
    %v1456 = vpack.c.b16 %v976, %v972
    %v1457 = vpack.c.b16 %v977, %v973
    %v1458 = vpack.c.b16 %v982, %v978
    %v1459 = vpack.c.b16 %v983, %v979
    %v1460 = vpack.c.b16 %v984, %v980
    %v1461 = vpack.c.b16 %v985, %v981
    %v1462 = vpack.c.b16 %v990, %v986
    %v1463 = vpack.c.b16 %v991, %v987
    %v1464 = vpack.c.b16 %v992, %v988
    %v1465 = vpack.c.b16 %v993, %v989
    %v1466 = vpack.c.b16 %v998, %v994
    %v1467 = vpack.c.b16 %v999, %v995
    %v1468 = vpack.c.b16 %v1000, %v996
    %v1469 = vpack.c.b16 %v1001, %v997
    %v1470 = vpack.c.b16 %v1006, %v1002
    %v1471 = vpack.c.b16 %v1007, %v1003
    %v1472 = vpack.c.b16 %v1008, %v1004
    %v1473 = vpack.c.b16 %v1009, %v1005
    %v1474 = vpack.c.b16 %v1014, %v1010
    %v1475 = vpack.c.b16 %v1015, %v1011
    %v1476 = vpack.c.b16 %v1016, %v1012
    %v1477 = vpack.c.b16 %v1017, %v1013
    %v1478 = vpack.c.b16 %v1022, %v1018
    %v1479 = vpack.c.b16 %v1023, %v1019
    %v1480 = vpack.c.b16 %v1024, %v1020
    %v1481 = vpack.c.b16 %v1025, %v1021
    %v1482 = vpack.c.b16 %v1030, %v1026
    %v1483 = vpack.c.b16 %v1031, %v1027
    %v1484 = vpack.c.b16 %v1032, %v1028
    %v1485 = vpack.c.b16 %v1033, %v1029
    %v1486 = vpack.c.b16 %v1038, %v1034
    %v1487 = vpack.c.b16 %v1039, %v1035
    %v1488 = vpack.c.b16 %v1040, %v1036
    %v1489 = vpack.c.b16 %v1041, %v1037
    %v1490 = vpack.c.b16 %v1046, %v1042
    %v1491 = vpack.c.b16 %v1047, %v1043
    %v1492 = vpack.c.b16 %v1048, %v1044
    %v1493 = vpack.c.b16 %v1049, %v1045
    %v1494 = vpack.c.b16 %v1054, %v1050
    %v1495 = vpack.c.b16 %v1055, %v1051
    %v1496 = vpack.c.b16 %v1056, %v1052
    %v1497 = vpack.c.b16 %v1057, %v1053
    %v1498 = vpack.c.b16 %v1062, %v1058
    %v1499 = vpack.c.b16 %v1063, %v1059
    %v1500 = vpack.c.b16 %v1064, %v1060
    %v1501 = vpack.c.b16 %v1065, %v1061
    %v1502 = vpack.c.b16 %v1070, %v1066
    %v1503 = vpack.c.b16 %v1071, %v1067
    %v1504 = vpack.c.b16 %v1072, %v1068
    %v1505 = vpack.c.b16 %v1073, %v1069
    %v1506 = vpack.c.b16 %v1078, %v1074
    %v1507 = vpack.c.b16 %v1079, %v1075
    %v1508 = vpack.c.b16 %v1080, %v1076
    %v1509 = vpack.c.b16 %v1081, %v1077
    %v1510 = vpack.c.b16 %v1086, %v1082
    %v1511 = vpack.c.b16 %v1087, %v1083
    %v1512 = vpack.c.b16 %v1088, %v1084
    %v1513 = vpack.c.b16 %v1089, %v1085
    %v1514 = vpack.c.b16 %v1094, %v1090
    %v1515 = vpack.c.b16 %v1095, %v1091
    %v1516 = vpack.c.b16 %v1096, %v1092
    %v1517 = vpack.c.b16 %v1097, %v1093
    %v1518 = vpack.c.b16 %v1102, %v1098
    %v1519 = vpack.c.b16 %v1103, %v1099
    %v1520 = vpack.c.b16 %v1104, %v1100
    %v1521 = vpack.c.b16 %v1105, %v1101
    %v1522 = vpack.c.b16 %v1110, %v1106
    %v1523 = vpack.c.b16 %v1111, %v1107
    %v1524 = vpack.c.b16 %v1112, %v1108
    %v1525 = vpack.c.b16 %v1113, %v1109
    %v1526 = vpack.c.b16 %v1118, %v1114
    %v1527 = vpack.c.b16 %v1119, %v1115
    %v1528 = vpack.c.b16 %v1120, %v1116
    %v1529 = vpack.c.b16 %v1121, %v1117
    %v1530 = vpack.c.b16 %v1126, %v1122
    %v1531 = vpack.c.b16 %v1127, %v1123
    %v1532 = vpack.c.b16 %v1128, %v1124
    %v1533 = vpack.c.b16 %v1129, %v1125
    %v1534 = vpack.c.b16 %v1134, %v1130
    %v1535 = vpack.c.b16 %v1135, %v1131
    %v1536 = vpack.c.b16 %v1136, %v1132
    %v1537 = vpack.c.b16 %v1137, %v1133
    %v1538 = vpack.c.b16 %v1142, %v1138
    %v1539 = vpack.c.b16 %v1143, %v1139
    %v1540 = vpack.c.b16 %v1144, %v1140
    %v1541 = vpack.c.b16 %v1145, %v1141
    %v1542 = vpack.c.b16 %v1150, %v1146
    %v1543 = vpack.c.b16 %v1151, %v1147
    %v1544 = vpack.c.b16 %v1152, %v1148
    %v1545 = vpack.c.b16 %v1153, %v1149
    %v1546 = vpack.c.b16 %v1158, %v1154
    %v1547 = vpack.c.b16 %v1159, %v1155
    %v1548 = vpack.c.b16 %v1160, %v1156
    %v1549 = vpack.c.b16 %v1161, %v1157
    %v1550 = vpack.c.b16 %v1166, %v1162
    %v1551 = vpack.c.b16 %v1167, %v1163
    %v1552 = vpack.c.b16 %v1168, %v1164
    %v1553 = vpack.c.b16 %v1169, %v1165
    %v1554 = vpack.c.b16 %v1174, %v1170
    %v1555 = vpack.c.b16 %v1175, %v1171
    %v1556 = vpack.c.b16 %v1176, %v1172
    %v1557 = vpack.c.b16 %v1177, %v1173
    %v1558 = vpack.c.b16 %v1182, %v1178
    %v1559 = vpack.c.b16 %v1183, %v1179
    %v1560 = vpack.c.b16 %v1184, %v1180
    %v1561 = vpack.c.b16 %v1185, %v1181
    %v1562 = vpack.c.b16 %v1190, %v1186
    %v1563 = vpack.c.b16 %v1191, %v1187
    %v1564 = vpack.c.b16 %v1192, %v1188
    %v1565 = vpack.c.b16 %v1193, %v1189
    %v1566 = vpack.c.b16 %v1198, %v1194
    %v1567 = vpack.c.b16 %v1199, %v1195
    %v1568 = vpack.c.b16 %v1200, %v1196
    %v1569 = vpack.c.b16 %v1201, %v1197
    %v1570 = vpack.c.b16 %v1206, %v1202
    %v1571 = vpack.c.b16 %v1207, %v1203
    %v1572 = vpack.c.b16 %v1208, %v1204
    %v1573 = vpack.c.b16 %v1209, %v1205
    %v1574 = vpack.c.b16 %v1214, %v1210
    %v1575 = vpack.c.b16 %v1215, %v1211
    %v1576 = vpack.c.b16 %v1216, %v1212
    %v1577 = vpack.c.b16 %v1217, %v1213
    %v1578 = vpack.c.b16 %v1222, %v1218
    %v1579 = vpack.c.b16 %v1223, %v1219
    %v1580 = vpack.c.b16 %v1224, %v1220
    %v1581 = vpack.c.b16 %v1225, %v1221
    %v1582 = vpack.c.b16 %v1230, %v1226
    %v1583 = vpack.c.b16 %v1231, %v1227
    %v1584 = vpack.c.b16 %v1232, %v1228
    %v1585 = vpack.c.b16 %v1233, %v1229
    %v1586 = vpack.c.b16 %v1238, %v1234
    %v1587 = vpack.c.b16 %v1239, %v1235
    %v1588 = vpack.c.b16 %v1240, %v1236
    %v1589 = vpack.c.b16 %v1241, %v1237
    %v1590 = vpack.c.b16 %v1246, %v1242
    %v1591 = vpack.c.b16 %v1247, %v1243
    %v1592 = vpack.c.b16 %v1248, %v1244
    %v1593 = vpack.c.b16 %v1249, %v1245
    %v1594 = vpack.c.b16 %v1254, %v1250
    %v1595 = vpack.c.b16 %v1255, %v1251
    %v1596 = vpack.c.b16 %v1256, %v1252
    %v1597 = vpack.c.b16 %v1257, %v1253
    %v1598 = vpack.c.b16 %v1262, %v1258
    %v1599 = vpack.c.b16 %v1263, %v1259
    %v1600 = vpack.c.b16 %v1264, %v1260
    %v1601 = vpack.c.b16 %v1265, %v1261
    %v1602 = vpack.c.b16 %v1270, %v1266
    %v1603 = vpack.c.b16 %v1271, %v1267
    %v1604 = vpack.c.b16 %v1272, %v1268
    %v1605 = vpack.c.b16 %v1273, %v1269
    %v1606 = vpack.c.b16 %v1278, %v1274
    %v1607 = vpack.c.b16 %v1279, %v1275
    %v1608 = vpack.c.b16 %v1280, %v1276
    %v1609 = vpack.c.b16 %v1281, %v1277
    %v1610 = vpack.c.b16 %v1286, %v1282
    %v1611 = vpack.c.b16 %v1287, %v1283
    %v1612 = vpack.c.b16 %v1288, %v1284
    %v1613 = vpack.c.b16 %v1289, %v1285
    %v1614 = vpack.c.b16 %v1294, %v1290
    %v1615 = vpack.c.b16 %v1295, %v1291
    %v1616 = vpack.c.b16 %v1296, %v1292
    %v1617 = vpack.c.b16 %v1297, %v1293
    %v1618 = vpack.c.b16 %v1302, %v1298
    %v1619 = vpack.c.b16 %v1303, %v1299
    %v1620 = vpack.c.b16 %v1304, %v1300
    %v1621 = vpack.c.b16 %v1305, %v1301
    %v1622 = vpack.c.b16 %v1310, %v1306
    %v1623 = vpack.c.b16 %v1311, %v1307
    %v1624 = vpack.c.b16 %v1312, %v1308
    %v1625 = vpack.c.b16 %v1313, %v1309
    %v1626 = vpack.c.b16 %v1318, %v1314
    %v1627 = vpack.c.b16 %v1319, %v1315
    %v1628 = vpack.c.b16 %v1320, %v1316
    %v1629 = vpack.c.b16 %v1321, %v1317
    %v1630 = vpack.c.b16 %v1326, %v1322
    %v1631 = vpack.c.b16 %v1327, %v1323
    %v1632 = vpack.c.b16 %v1328, %v1324
    %v1633 = vpack.c.b16 %v1329, %v1325
    %v1634 = vpack.c.b16 %v1334, %v1330
    %v1635 = vpack.c.b16 %v1335, %v1331
    %v1636 = vpack.c.b16 %v1336, %v1332
    %v1637 = vpack.c.b16 %v1337, %v1333
    %v1638 = vpack.c.b16 %v1342, %v1338
    %v1639 = vpack.c.b16 %v1343, %v1339
    %v1640 = vpack.c.b16 %v1344, %v1340
    %v1641 = vpack.c.b16 %v1345, %v1341
    %v1642 = vpack.c.b16 %v1350, %v1346
    %v1643 = vpack.c.b16 %v1351, %v1347
    %v1644 = vpack.c.b16 %v1352, %v1348
    %v1645 = vpack.c.b16 %v1353, %v1349
    %v1646 = vpack.c.b16 %v1358, %v1354
    %v1647 = vpack.c.b16 %v1359, %v1355
    %v1648 = vpack.c.b16 %v1360, %v1356
    %v1649 = vpack.c.b16 %v1361, %v1357
    %v1650 = vpack.c.b16 %v1366, %v1362
    %v1651 = vpack.c.b16 %v1367, %v1363
    %v1652 = vpack.c.b16 %v1368, %v1364
    %v1653 = vpack.c.b16 %v1369, %v1365
    %v1654 = vpack.c.b16 %v1374, %v1370
    %v1655 = vpack.c.b16 %v1375, %v1371
    %v1656 = vpack.c.b16 %v1376, %v1372
    %v1657 = vpack.c.b16 %v1377, %v1373
    %v1658 = vpack.c.b16 %v1382, %v1378
    %v1659 = vpack.c.b16 %v1383, %v1379
    %v1660 = vpack.c.b16 %v1384, %v1380
    %v1661 = vpack.c.b16 %v1385, %v1381
    %v1662 = vpack.c.b16 %v1390, %v1386
    %v1663 = vpack.c.b16 %v1391, %v1387
    %v1664 = vpack.c.b16 %v1392, %v1388
    %v1665 = vpack.c.b16 %v1393, %v1389
    %v1666 = vpack.c.b16 %v1398, %v1394
    %v1667 = vpack.c.b16 %v1399, %v1395
    %v1668 = vpack.c.b16 %v1400, %v1396
    %v1669 = vpack.c.b16 %v1401, %v1397
    %v1670 = vpack.c.b16 %v1406, %v1402
    %v1671 = vpack.c.b16 %v1407, %v1403
    %v1672 = vpack.c.b16 %v1408, %v1404
    %v1673 = vpack.c.b16 %v1409, %v1405
    %v1674 = vpack.c.b16 %v1414, %v1410
    %v1675 = vpack.c.b16 %v1415, %v1411
    %v1676 = vpack.c.b16 %v1416, %v1412
    %v1677 = vpack.c.b16 %v1417, %v1413
    %v1678 = vpack.c.b16 %v1422, %v1418
    %v1679 = vpack.c.b16 %v1423, %v1419
    %v1680 = vpack.c.b16 %v1424, %v1420
    %v1681 = vpack.c.b16 %v1425, %v1421
    %1938 = vmatprep.subr.bf16.mxu0 %v1427
    %1939 = vmatpush1.bf16.msra.mxu0 %v1426
    %1940 = vmatprep.subr.bf16.mxu0 %v1431
    %1941 = vmatpush1.bf16.msra.mxu0 %v1430
    %1942 = vmatprep.subr.bf16.mxu0 %v1435
    %1943 = vmatpush1.bf16.msra.mxu0 %v1434
    %1944 = vmatprep.subr.bf16.mxu0 %v1439
    %1945 = vmatpush1.bf16.msra.mxu0 %v1438
    %1946 = vmatprep.subr.bf16.mxu0 %v1443
    %1947 = vmatpush1.bf16.msra.mxu0 %v1442
    %1948 = vmatprep.subr.bf16.mxu0 %v1447
    %1949 = vmatpush1.bf16.msra.mxu0 %v1446
    %1950 = vmatprep.subr.bf16.mxu0 %v1451
    %1951 = vmatpush1.bf16.msra.mxu0 %v1450
    %1952 = vmatprep.subr.bf16.mxu0 %v1455
    %1953 = vmatpush1.bf16.msra.mxu0 %v1454
    %1954 = vmatprep.subr.bf16.mxu0 %v1459
    %1955 = vmatpush1.bf16.msra.mxu0 %v1458
    %1956 = vmatprep.subr.bf16.mxu0 %v1463
    %1957 = vmatpush1.bf16.msra.mxu0 %v1462
    %1958 = vmatprep.subr.bf16.mxu0 %v1467
    %1959 = vmatpush1.bf16.msra.mxu0 %v1466
    %1960 = vmatprep.subr.bf16.mxu0 %v1471
    %1961 = vmatpush1.bf16.msra.mxu0 %v1470
    %1962 = vmatprep.subr.bf16.mxu0 %v1475
    %1963 = vmatpush1.bf16.msra.mxu0 %v1474
    %1964 = vmatprep.subr.bf16.mxu0 %v1479
    %1965 = vmatpush1.bf16.msra.mxu0 %v1478
    %1966 = vmatprep.subr.bf16.mxu0 %v1483
    %1967 = vmatpush1.bf16.msra.mxu0 %v1482
    %1968 = vmatprep.subr.bf16.mxu0 %v1487
    %1969 = vmatpush1.bf16.msra.mxu0 %v1486
    %1970 = vmatprep.mubr.bf16.mxu0 %v373
    %1971 = vmatmul.mubr.bf16.gmra.mrb[0].mxu0 %v372
    %v1972 = vpop.f32.mrb[0].mxu0
    %v1973 = vadd.f32 %v641, %v1972
    %v1974 = vpop.f32.mrb[0].mxu0
    %v1975 = vadd.f32 %v645, %v1974
    %v1976 = vpop.f32.mrb[0].mxu0
    %v1977 = vpop.f32.mrb[0].mxu0
    %1978 = vdwg.mxu0
    %1979 = vmatprep.subr.bf16.mxu0 %v1491
    %1980 = vmatpush1.bf16.msra.mxu0 %v1490
    %1981 = vmatprep.subr.bf16.mxu0 %v1495
    %1982 = vmatpush1.bf16.msra.mxu0 %v1494
    %1983 = vmatprep.subr.bf16.mxu0 %v1499
    %1984 = vmatpush1.bf16.msra.mxu0 %v1498
    %1985 = vmatprep.subr.bf16.mxu0 %v1503
    %1986 = vmatpush1.bf16.msra.mxu0 %v1502
    %1987 = vmatprep.subr.bf16.mxu0 %v1507
    %1988 = vmatpush1.bf16.msra.mxu0 %v1506
    %1989 = vmatprep.subr.bf16.mxu0 %v1511
    %1990 = vmatpush1.bf16.msra.mxu0 %v1510
    %1991 = vmatprep.subr.bf16.mxu0 %v1515
    %1992 = vmatpush1.bf16.msra.mxu0 %v1514
    %1993 = vmatprep.subr.bf16.mxu0 %v1519
    %1994 = vmatpush1.bf16.msra.mxu0 %v1518
    %1995 = vmatprep.subr.bf16.mxu0 %v1523
    %1996 = vmatpush1.bf16.msra.mxu0 %v1522
    %1997 = vmatprep.subr.bf16.mxu0 %v1527
    %1998 = vmatpush1.bf16.msra.mxu0 %v1526
    %1999 = vmatprep.subr.bf16.mxu0 %v1531
    %2000 = vmatpush1.bf16.msra.mxu0 %v1530
    %2001 = vmatprep.subr.bf16.mxu0 %v1535
    %2002 = vmatpush1.bf16.msra.mxu0 %v1534
    %2003 = vmatprep.subr.bf16.mxu0 %v1539
    %2004 = vmatpush1.bf16.msra.mxu0 %v1538
    %2005 = vmatprep.subr.bf16.mxu0 %v1543
    %2006 = vmatpush1.bf16.msra.mxu0 %v1542
    %2007 = vmatprep.subr.bf16.mxu0 %v1547
    %2008 = vmatpush1.bf16.msra.mxu0 %v1546
    %2009 = vmatprep.subr.bf16.mxu0 %v1551
    %2010 = vmatpush1.bf16.msra.mxu0 %v1550
    %2011 = vmatprep.mubr.bf16.mxu0 %v375
    %2012 = vmatmul.mubr.bf16.gmra.mrb[0].mxu0 %v374
    %v2013 = vpop.f32.mrb[0].mxu0
    %v2014 = vadd.f32 %v1973, %v2013
    %v2015 = vpop.f32.mrb[0].mxu0
    %v2016 = vadd.f32 %v1975, %v2015
    %v2017 = vpop.f32.mrb[0].mxu0
    %v2018 = vpop.f32.mrb[0].mxu0
    %2019 = vdwg.mxu0
    %2020 = vmatprep.subr.bf16.mxu0 %v1555
    %2021 = vmatpush1.bf16.msra.mxu0 %v1554
    %2022 = vmatprep.subr.bf16.mxu0 %v1559
    %2023 = vmatpush1.bf16.msra.mxu0 %v1558
    %2024 = vmatprep.subr.bf16.mxu0 %v1563
    %2025 = vmatpush1.bf16.msra.mxu0 %v1562
    %2026 = vmatprep.subr.bf16.mxu0 %v1567
    %2027 = vmatpush1.bf16.msra.mxu0 %v1566
    %2028 = vmatprep.subr.bf16.mxu0 %v1571
    %2029 = vmatpush1.bf16.msra.mxu0 %v1570
    %2030 = vmatprep.subr.bf16.mxu0 %v1575
    %2031 = vmatpush1.bf16.msra.mxu0 %v1574
    %2032 = vmatprep.subr.bf16.mxu0 %v1579
    %2033 = vmatpush1.bf16.msra.mxu0 %v1578
    %2034 = vmatprep.subr.bf16.mxu0 %v1583
    %2035 = vmatpush1.bf16.msra.mxu0 %v1582
    %2036 = vmatprep.subr.bf16.mxu0 %v1587
    %2037 = vmatpush1.bf16.msra.mxu0 %v1586
    %2038 = vmatprep.subr.bf16.mxu0 %v1591
    %2039 = vmatpush1.bf16.msra.mxu0 %v1590
    %2040 = vmatprep.subr.bf16.mxu0 %v1595
    %2041 = vmatpush1.bf16.msra.mxu0 %v1594
    %2042 = vmatprep.subr.bf16.mxu0 %v1599
    %2043 = vmatpush1.bf16.msra.mxu0 %v1598
    %2044 = vmatprep.subr.bf16.mxu0 %v1603
    %2045 = vmatpush1.bf16.msra.mxu0 %v1602
    %2046 = vmatprep.subr.bf16.mxu0 %v1607
    %2047 = vmatpush1.bf16.msra.mxu0 %v1606
    %2048 = vmatprep.subr.bf16.mxu0 %v1611
    %2049 = vmatpush1.bf16.msra.mxu0 %v1610
    %2050 = vmatprep.subr.bf16.mxu0 %v1615
    %2051 = vmatpush1.bf16.msra.mxu0 %v1614
    %2052 = vmatprep.mubr.bf16.mxu0 %v377
    %2053 = vmatmul.mubr.bf16.gmra.mrb[0].mxu0 %v376
    %v2054 = vpop.f32.mrb[0].mxu0
    %v2055 = vadd.f32 %v2014, %v2054
    %v2056 = vpop.f32.mrb[0].mxu0
    %v2057 = vadd.f32 %v2016, %v2056
    %v2058 = vpop.f32.mrb[0].mxu0
    %v2059 = vpop.f32.mrb[0].mxu0
    %2060 = vdwg.mxu0
    %2061 = vmatprep.subr.bf16.mxu0 %v1619
    %2062 = vmatpush1.bf16.msra.mxu0 %v1618
    %2063 = vmatprep.subr.bf16.mxu0 %v1623
    %2064 = vmatpush1.bf16.msra.mxu0 %v1622
    %2065 = vmatprep.subr.bf16.mxu0 %v1627
    %2066 = vmatpush1.bf16.msra.mxu0 %v1626
    %2067 = vmatprep.subr.bf16.mxu0 %v1631
    %2068 = vmatpush1.bf16.msra.mxu0 %v1630
    %2069 = vmatprep.subr.bf16.mxu0 %v1635
    %2070 = vmatpush1.bf16.msra.mxu0 %v1634
    %2071 = vmatprep.subr.bf16.mxu0 %v1639
    %2072 = vmatpush1.bf16.msra.mxu0 %v1638
    %2073 = vmatprep.subr.bf16.mxu0 %v1643
    %2074 = vmatpush1.bf16.msra.mxu0 %v1642
    %2075 = vmatprep.subr.bf16.mxu0 %v1647
    %2076 = vmatpush1.bf16.msra.mxu0 %v1646
    %2077 = vmatprep.subr.bf16.mxu0 %v1651
    %2078 = vmatpush1.bf16.msra.mxu0 %v1650
    %2079 = vmatprep.subr.bf16.mxu0 %v1655
    %2080 = vmatpush1.bf16.msra.mxu0 %v1654
    %2081 = vmatprep.subr.bf16.mxu0 %v1659
    %2082 = vmatpush1.bf16.msra.mxu0 %v1658
    %2083 = vmatprep.subr.bf16.mxu0 %v1663
    %2084 = vmatpush1.bf16.msra.mxu0 %v1662
    %2085 = vmatprep.subr.bf16.mxu0 %v1667
    %2086 = vmatpush1.bf16.msra.mxu0 %v1666
    %2087 = vmatprep.subr.bf16.mxu0 %v1671
    %2088 = vmatpush1.bf16.msra.mxu0 %v1670
    %2089 = vmatprep.subr.bf16.mxu0 %v1675
    %2090 = vmatpush1.bf16.msra.mxu0 %v1674
    %2091 = vmatprep.subr.bf16.mxu0 %v1679
    %2092 = vmatpush1.bf16.msra.mxu0 %v1678
    %2093 = vmatprep.mubr.bf16.mxu0 %v379
    %2094 = vmatmul.mubr.bf16.gmra.mrb[0].mxu0 %v378
    %v2095 = vpop.f32.mrb[0].mxu0
    %v2096 = vadd.f32 %v2055, %v2095
    %v2097 = vpop.f32.mrb[0].mxu0
    %v2098 = vadd.f32 %v2057, %v2097
    %v2099 = vpop.f32.mrb[0].mxu0
    %v2100 = vpop.f32.mrb[0].mxu0
    %2101 = vdwg.mxu0
    %2102 = vmatprep.subr.bf16.mxu0 %v1429
    %2103 = vmatpush1.bf16.msra.mxu0 %v1428
    %2104 = vmatprep.subr.bf16.mxu0 %v1433
    %2105 = vmatpush1.bf16.msra.mxu0 %v1432
    %2106 = vmatprep.subr.bf16.mxu0 %v1437
    %2107 = vmatpush1.bf16.msra.mxu0 %v1436
    %2108 = vmatprep.subr.bf16.mxu0 %v1441
    %2109 = vmatpush1.bf16.msra.mxu0 %v1440
    %2110 = vmatprep.subr.bf16.mxu0 %v1445
    %2111 = vmatpush1.bf16.msra.mxu0 %v1444
    %2112 = vmatprep.subr.bf16.mxu0 %v1449
    %2113 = vmatpush1.bf16.msra.mxu0 %v1448
    %2114 = vmatprep.subr.bf16.mxu0 %v1453
    %2115 = vmatpush1.bf16.msra.mxu0 %v1452
    %2116 = vmatprep.subr.bf16.mxu0 %v1457
    %2117 = vmatpush1.bf16.msra.mxu0 %v1456
    %2118 = vmatprep.subr.bf16.mxu0 %v1461
    %2119 = vmatpush1.bf16.msra.mxu0 %v1460
    %2120 = vmatprep.subr.bf16.mxu0 %v1465
    %2121 = vmatpush1.bf16.msra.mxu0 %v1464
    %2122 = vmatprep.subr.bf16.mxu0 %v1469
    %2123 = vmatpush1.bf16.msra.mxu0 %v1468
    %2124 = vmatprep.subr.bf16.mxu0 %v1473
    %2125 = vmatpush1.bf16.msra.mxu0 %v1472
    %2126 = vmatprep.subr.bf16.mxu0 %v1477
    %2127 = vmatpush1.bf16.msra.mxu0 %v1476
    %2128 = vmatprep.subr.bf16.mxu0 %v1481
    %2129 = vmatpush1.bf16.msra.mxu0 %v1480
    %2130 = vmatprep.subr.bf16.mxu0 %v1485
    %2131 = vmatpush1.bf16.msra.mxu0 %v1484
    %2132 = vmatprep.subr.bf16.mxu0 %v1489
    %2133 = vmatpush1.bf16.msra.mxu0 %v1488
    %2134 = vmatprep.mubr.bf16.mxu0 %v373
    %2135 = vmatmul.mubr.bf16.gmra.mrb[0].mxu0 %v372
    %v2136 = vpop.f32.mrb[0].mxu0
    %v2137 = vadd.f32 %v649, %v2136
    %v2138 = vpop.f32.mrb[0].mxu0
    %v2139 = vadd.f32 %v653, %v2138
    %v2140 = vpop.f32.mrb[0].mxu0
    %v2141 = vpop.f32.mrb[0].mxu0
    %2142 = vdwg.mxu0
    %2143 = vmatprep.subr.bf16.mxu0 %v1493
    %2144 = vmatpush1.bf16.msra.mxu0 %v1492
    %2145 = vmatprep.subr.bf16.mxu0 %v1497
    %2146 = vmatpush1.bf16.msra.mxu0 %v1496
    %2147 = vmatprep.subr.bf16.mxu0 %v1501
    %2148 = vmatpush1.bf16.msra.mxu0 %v1500
    %2149 = vmatprep.subr.bf16.mxu0 %v1505
    %2150 = vmatpush1.bf16.msra.mxu0 %v1504
    %2151 = vmatprep.subr.bf16.mxu0 %v1509
    %2152 = vmatpush1.bf16.msra.mxu0 %v1508
    %2153 = vmatprep.subr.bf16.mxu0 %v1513
    %2154 = vmatpush1.bf16.msra.mxu0 %v1512
    %2155 = vmatprep.subr.bf16.mxu0 %v1517
    %2156 = vmatpush1.bf16.msra.mxu0 %v1516
    %2157 = vmatprep.subr.bf16.mxu0 %v1521
    %2158 = vmatpush1.bf16.msra.mxu0 %v1520
    %2159 = vmatprep.subr.bf16.mxu0 %v1525
    %2160 = vmatpush1.bf16.msra.mxu0 %v1524
    %2161 = vmatprep.subr.bf16.mxu0 %v1529
    %2162 = vmatpush1.bf16.msra.mxu0 %v1528
    %2163 = vmatprep.subr.bf16.mxu0 %v1533
    %2164 = vmatpush1.bf16.msra.mxu0 %v1532
    %2165 = vmatprep.subr.bf16.mxu0 %v1537
    %2166 = vmatpush1.bf16.msra.mxu0 %v1536
    %2167 = vmatprep.subr.bf16.mxu0 %v1541
    %2168 = vmatpush1.bf16.msra.mxu0 %v1540
    %2169 = vmatprep.subr.bf16.mxu0 %v1545
    %2170 = vmatpush1.bf16.msra.mxu0 %v1544
    %2171 = vmatprep.subr.bf16.mxu0 %v1549
    %2172 = vmatpush1.bf16.msra.mxu0 %v1548
    %2173 = vmatprep.subr.bf16.mxu0 %v1553
    %2174 = vmatpush1.bf16.msra.mxu0 %v1552
    %2175 = vmatprep.mubr.bf16.mxu0 %v375
    %2176 = vmatmul.mubr.bf16.gmra.mrb[0].mxu0 %v374
    %v2177 = vpop.f32.mrb[0].mxu0
    %v2178 = vadd.f32 %v2137, %v2177
    %v2179 = vpop.f32.mrb[0].mxu0
    %v2180 = vadd.f32 %v2139, %v2179
    %v2181 = vpop.f32.mrb[0].mxu0
    %v2182 = vpop.f32.mrb[0].mxu0
    %2183 = vdwg.mxu0
    %2184 = vmatprep.subr.bf16.mxu0 %v1557
    %2185 = vmatpush1.bf16.msra.mxu0 %v1556
    %2186 = vmatprep.subr.bf16.mxu0 %v1561
    %2187 = vmatpush1.bf16.msra.mxu0 %v1560
    %2188 = vmatprep.subr.bf16.mxu0 %v1565
    %2189 = vmatpush1.bf16.msra.mxu0 %v1564
    %2190 = vmatprep.subr.bf16.mxu0 %v1569
    %2191 = vmatpush1.bf16.msra.mxu0 %v1568
    %2192 = vmatprep.subr.bf16.mxu0 %v1573
    %2193 = vmatpush1.bf16.msra.mxu0 %v1572
    %2194 = vmatprep.subr.bf16.mxu0 %v1577
    %2195 = vmatpush1.bf16.msra.mxu0 %v1576
    %2196 = vmatprep.subr.bf16.mxu0 %v1581
    %2197 = vmatpush1.bf16.msra.mxu0 %v1580
    %2198 = vmatprep.subr.bf16.mxu0 %v1585
    %2199 = vmatpush1.bf16.msra.mxu0 %v1584
    %2200 = vmatprep.subr.bf16.mxu0 %v1589
    %2201 = vmatpush1.bf16.msra.mxu0 %v1588
    %2202 = vmatprep.subr.bf16.mxu0 %v1593
    %2203 = vmatpush1.bf16.msra.mxu0 %v1592
    %2204 = vmatprep.subr.bf16.mxu0 %v1597
    %2205 = vmatpush1.bf16.msra.mxu0 %v1596
    %2206 = vmatprep.subr.bf16.mxu0 %v1601
    %2207 = vmatpush1.bf16.msra.mxu0 %v1600
    %2208 = vmatprep.subr.bf16.mxu0 %v1605
    %2209 = vmatpush1.bf16.msra.mxu0 %v1604
    %2210 = vmatprep.subr.bf16.mxu0 %v1609
    %2211 = vmatpush1.bf16.msra.mxu0 %v1608
    %2212 = vmatprep.subr.bf16.mxu0 %v1613
    %2213 = vmatpush1.bf16.msra.mxu0 %v1612
    %2214 = vmatprep.subr.bf16.mxu0 %v1617
    %2215 = vmatpush1.bf16.msra.mxu0 %v1616
    %2216 = vmatprep.mubr.bf16.mxu0 %v377
    %2217 = vmatmul.mubr.bf16.gmra.mrb[0].mxu0 %v376
    %v2218 = vpop.f32.mrb[0].mxu0
    %v2219 = vadd.f32 %v2178, %v2218
    %v2220 = vpop.f32.mrb[0].mxu0
    %v2221 = vadd.f32 %v2180, %v2220
    %v2222 = vpop.f32.mrb[0].mxu0
    %v2223 = vpop.f32.mrb[0].mxu0
    %2224 = vdwg.mxu0
    %2225 = vmatprep.subr.bf16.mxu0 %v1621
    %2226 = vmatpush1.bf16.msra.mxu0 %v1620
    %2227 = vmatprep.subr.bf16.mxu0 %v1625
    %2228 = vmatpush1.bf16.msra.mxu0 %v1624
    %2229 = vmatprep.subr.bf16.mxu0 %v1629
    %2230 = vmatpush1.bf16.msra.mxu0 %v1628
    %2231 = vmatprep.subr.bf16.mxu0 %v1633
    %2232 = vmatpush1.bf16.msra.mxu0 %v1632
    %2233 = vmatprep.subr.bf16.mxu0 %v1637
    %2234 = vmatpush1.bf16.msra.mxu0 %v1636
    %2235 = vmatprep.subr.bf16.mxu0 %v1641
    %2236 = vmatpush1.bf16.msra.mxu0 %v1640
    %2237 = vmatprep.subr.bf16.mxu0 %v1645
    %2238 = vmatpush1.bf16.msra.mxu0 %v1644
    %2239 = vmatprep.subr.bf16.mxu0 %v1649
    %2240 = vmatpush1.bf16.msra.mxu0 %v1648
    %2241 = vmatprep.subr.bf16.mxu0 %v1653
    %2242 = vmatpush1.bf16.msra.mxu0 %v1652
    %2243 = vmatprep.subr.bf16.mxu0 %v1657
    %2244 = vmatpush1.bf16.msra.mxu0 %v1656
    %2245 = vmatprep.subr.bf16.mxu0 %v1661
    %2246 = vmatpush1.bf16.msra.mxu0 %v1660
    %2247 = vmatprep.subr.bf16.mxu0 %v1665
    %2248 = vmatpush1.bf16.msra.mxu0 %v1664
    %2249 = vmatprep.subr.bf16.mxu0 %v1669
    %2250 = vmatpush1.bf16.msra.mxu0 %v1668
    %2251 = vmatprep.subr.bf16.mxu0 %v1673
    %2252 = vmatpush1.bf16.msra.mxu0 %v1672
    %2253 = vmatprep.subr.bf16.mxu0 %v1677
    %2254 = vmatpush1.bf16.msra.mxu0 %v1676
    %2255 = vmatprep.subr.bf16.mxu0 %v1681
    %2256 = vmatpush1.bf16.msra.mxu0 %v1680
    %2257 = vmatprep.mubr.bf16.mxu0 %v379
    %2258 = vmatmul.mubr.bf16.gmra.mrb[0].mxu0 %v378
    %v2259 = vpop.f32.mrb[0].mxu0
    %v2260 = vadd.f32 %v2219, %v2259
    %v2261 = vpop.f32.mrb[0].mxu0
    %v2262 = vadd.f32 %v2221, %v2261
    %v2263 = vpop.f32.mrb[0].mxu0
    %v2264 = vpop.f32.mrb[0].mxu0
    %2265 = vdwg.mxu0
    %vm2266 = vcmp.ge.f32.partialorder %v2096, 0.0
    %vm2267 = vcmp.ge.f32.partialorder %v2098, 0.0
    %vm2268 = vcmp.ge.f32.partialorder %v2260, 0.0
    %vm2269 = vcmp.ge.f32.partialorder %v2262, 0.0
    %v2270 = vmul.f32 %v2096, 0.2
    %v2271 = vmul.f32 %v2098, 0.2
    %v2272 = vmul.f32 %v2260, 0.2
    %v2273 = vmul.f32 %v2262, 0.2
    %v2274 = vsel %vm2266, %v2096, %v2270
    %v2275 = vsel %vm2267, %v2098, %v2271
    %v2276 = vsel %vm2268, %v2260, %v2272
    %v2277 = vsel %vm2269, %v2262, %v2273
    %v2278 = vpack.c.bf16 %v2274, %v2274
    %v2279 = vpack.c.bf16 %v2275, %v2275
    %v2280 = vpack.c.bf16 %v2276, %v2276
    %v2281 = vpack.c.bf16 %v2277, %v2277
    %v2282 = vld [vmem:[#allocation9] sm:$0xff]
    %v2283 = vld [vmem:[#allocation9 + $0x8] sm:$0xff]
    %v2284 = vld [vmem:[#allocation9 + $0x10] sm:$0xff]
    %v2285 = vld [vmem:[#allocation9 + $0x18] sm:$0xff]
    %v2286 = vld [vmem:[#allocation9 + $0x20] sm:$0xff]
    %v2287 = vld [vmem:[#allocation9 + $0x28] sm:$0xff]
    %v2288 = vld [vmem:[#allocation9 + $0x30] sm:$0xff]
    %v2289 = vld [vmem:[#allocation9 + $0x38] sm:$0xff]
    %v2290 = vld [vmem:[#allocation9 + $0x40] sm:$0xff]
    %v2291 = vld [vmem:[#allocation9 + $0x48] sm:$0xff]
    %v2292 = vld [vmem:[#allocation9 + $0x50] sm:$0xff]
    %v2293 = vld [vmem:[#allocation9 + $0x58] sm:$0xff]
    %v2294 = vld [vmem:[#allocation9 + $0x60] sm:$0xff]
    %v2295 = vld [vmem:[#allocation9 + $0x68] sm:$0xff]
    %v2296 = vld [vmem:[#allocation9 + $0x70] sm:$0xff]
    %v2297 = vld [vmem:[#allocation9 + $0x78] sm:$0xff]
    %v2298 = vld [vmem:[#allocation9 + $0x80] sm:$0xff]
    %v2299 = vld [vmem:[#allocation9 + $0x88] sm:$0xff]
    %v2300 = vld [vmem:[#allocation9 + $0x90] sm:$0xff]
    %v2301 = vld [vmem:[#allocation9 + $0x98] sm:$0xff]
    %v2302 = vld [vmem:[#allocation9 + $0xa0] sm:$0xff]
    %v2303 = vld [vmem:[#allocation9 + $0xa8] sm:$0xff]
    %v2304 = vld [vmem:[#allocation9 + $0xb0] sm:$0xff]
    %v2305 = vld [vmem:[#allocation9 + $0xb8] sm:$0xff]
    %v2306 = vld [vmem:[#allocation9 + $0xc0] sm:$0xff]
    %v2307 = vld [vmem:[#allocation9 + $0xc8] sm:$0xff]
    %v2308 = vld [vmem:[#allocation9 + $0xd0] sm:$0xff]
    %v2309 = vld [vmem:[#allocation9 + $0xd8] sm:$0xff]
    %v2310 = vld [vmem:[#allocation9 + $0xe0] sm:$0xff]
    %v2311 = vld [vmem:[#allocation9 + $0xe8] sm:$0xff]
    %v2312 = vld [vmem:[#allocation9 + $0xf0] sm:$0xff]
    %v2313 = vld [vmem:[#allocation9 + $0xf8] sm:$0xff]
    %v2314 = vld [vmem:[#allocation9 + $0x100] sm:$0xff]
    %v2315 = vld [vmem:[#allocation9 + $0x108] sm:$0xff]
    %v2316 = vld [vmem:[#allocation9 + $0x110] sm:$0xff]
    %v2317 = vld [vmem:[#allocation9 + $0x118] sm:$0xff]
    %v2318 = vld [vmem:[#allocation9 + $0x120] sm:$0xff]
    %v2319 = vld [vmem:[#allocation9 + $0x128] sm:$0xff]
    %v2320 = vld [vmem:[#allocation9 + $0x130] sm:$0xff]
    %v2321 = vld [vmem:[#allocation9 + $0x138] sm:$0xff]
    %v2322 = vld [vmem:[#allocation9 + $0x140] sm:$0xff]
    %v2323 = vld [vmem:[#allocation9 + $0x148] sm:$0xff]
    %v2324 = vld [vmem:[#allocation9 + $0x150] sm:$0xff]
    %v2325 = vld [vmem:[#allocation9 + $0x158] sm:$0xff]
    %v2326 = vld [vmem:[#allocation9 + $0x160] sm:$0xff]
    %v2327 = vld [vmem:[#allocation9 + $0x168] sm:$0xff]
    %v2328 = vld [vmem:[#allocation9 + $0x170] sm:$0xff]
    %v2329 = vld [vmem:[#allocation9 + $0x178] sm:$0xff]
    %v2330 = vld [vmem:[#allocation9 + $0x180] sm:$0xff]
    %v2331 = vld [vmem:[#allocation9 + $0x188] sm:$0xff]
    %v2332 = vld [vmem:[#allocation9 + $0x190] sm:$0xff]
    %v2333 = vld [vmem:[#allocation9 + $0x198] sm:$0xff]
    %v2334 = vld [vmem:[#allocation9 + $0x1a0] sm:$0xff]
    %v2335 = vld [vmem:[#allocation9 + $0x1a8] sm:$0xff]
    %v2336 = vld [vmem:[#allocation9 + $0x1b0] sm:$0xff]
    %v2337 = vld [vmem:[#allocation9 + $0x1b8] sm:$0xff]
    %v2338 = vld [vmem:[#allocation9 + $0x1c0] sm:$0xff]
    %v2339 = vld [vmem:[#allocation9 + $0x1c8] sm:$0xff]
    %v2340 = vld [vmem:[#allocation9 + $0x1d0] sm:$0xff]
    %v2341 = vld [vmem:[#allocation9 + $0x1d8] sm:$0xff]
    %v2342 = vld [vmem:[#allocation9 + $0x1e0] sm:$0xff]
    %v2343 = vld [vmem:[#allocation9 + $0x1e8] sm:$0xff]
    %v2344 = vld [vmem:[#allocation9 + $0x1f0] sm:$0xff]
    %v2345 = vld [vmem:[#allocation9 + $0x1f8] sm:$0xff]
    %v2346 = vld [vmem:[%s6] sm:$0x3]
    %v2348 = vlaneseq
    %v2349 = vshrl.u32 %v2348, 7
    %v2350 = vsub.s32 0, %v2349
    %v2351 = vrot.slane %v2346, %v2350
    %v2352 = vlaneseq
    %v2353 = vshrl.u32 %v2352, 7
    %v2354 = vsub.s32 1, %v2353
    %v2355 = vrot.slane %v2346, %v2354
    %v2422 = vunpack.c.l.b16 %v2282
    %v2423 = vunpack.c.h.b16 %v2282
    %v2424 = vunpack.c.l.b16 %v2283
    %v2425 = vunpack.c.h.b16 %v2283
    %v2426 = vunpack.c.l.b16 %v2284
    %v2427 = vunpack.c.h.b16 %v2284
    %v2428 = vunpack.c.l.b16 %v2285
    %v2429 = vunpack.c.h.b16 %v2285
    %v2430 = vunpack.c.l.b16 %v2286
    %v2431 = vunpack.c.h.b16 %v2286
    %v2432 = vunpack.c.l.b16 %v2287
    %v2433 = vunpack.c.h.b16 %v2287
    %v2434 = vunpack.c.l.b16 %v2288
    %v2435 = vunpack.c.h.b16 %v2288
    %v2436 = vunpack.c.l.b16 %v2289
    %v2437 = vunpack.c.h.b16 %v2289
    %v2438 = vunpack.c.l.b16 %v2290
    %v2439 = vunpack.c.h.b16 %v2290
    %v2440 = vunpack.c.l.b16 %v2291
    %v2441 = vunpack.c.h.b16 %v2291
    %v2442 = vunpack.c.l.b16 %v2292
    %v2443 = vunpack.c.h.b16 %v2292
    %v2444 = vunpack.c.l.b16 %v2293
    %v2445 = vunpack.c.h.b16 %v2293
    %v2446 = vunpack.c.l.b16 %v2294
    %v2447 = vunpack.c.h.b16 %v2294
    %v2448 = vunpack.c.l.b16 %v2295
    %v2449 = vunpack.c.h.b16 %v2295
    %v2450 = vunpack.c.l.b16 %v2296
    %v2451 = vunpack.c.h.b16 %v2296
    %v2452 = vunpack.c.l.b16 %v2297
    %v2453 = vunpack.c.h.b16 %v2297
    %v2454 = vunpack.c.l.b16 %v2298
    %v2455 = vunpack.c.h.b16 %v2298
    %v2456 = vunpack.c.l.b16 %v2299
    %v2457 = vunpack.c.h.b16 %v2299
    %v2458 = vunpack.c.l.b16 %v2300
    %v2459 = vunpack.c.h.b16 %v2300
    %v2460 = vunpack.c.l.b16 %v2301
    %v2461 = vunpack.c.h.b16 %v2301
    %v2462 = vunpack.c.l.b16 %v2302
    %v2463 = vunpack.c.h.b16 %v2302
    %v2464 = vunpack.c.l.b16 %v2303
    %v2465 = vunpack.c.h.b16 %v2303
    %v2466 = vunpack.c.l.b16 %v2304
    %v2467 = vunpack.c.h.b16 %v2304
    %v2468 = vunpack.c.l.b16 %v2305
    %v2469 = vunpack.c.h.b16 %v2305
    %v2470 = vunpack.c.l.b16 %v2306
    %v2471 = vunpack.c.h.b16 %v2306
    %v2472 = vunpack.c.l.b16 %v2307
    %v2473 = vunpack.c.h.b16 %v2307
    %v2474 = vunpack.c.l.b16 %v2308
    %v2475 = vunpack.c.h.b16 %v2308
    %v2476 = vunpack.c.l.b16 %v2309
    %v2477 = vunpack.c.h.b16 %v2309
    %v2478 = vunpack.c.l.b16 %v2310
    %v2479 = vunpack.c.h.b16 %v2310
    %v2480 = vunpack.c.l.b16 %v2311
    %v2481 = vunpack.c.h.b16 %v2311
    %v2482 = vunpack.c.l.b16 %v2312
    %v2483 = vunpack.c.h.b16 %v2312
    %v2484 = vunpack.c.l.b16 %v2313
    %v2485 = vunpack.c.h.b16 %v2313
    %v2486 = vunpack.c.l.b16 %v2314
    %v2487 = vunpack.c.h.b16 %v2314
    %v2488 = vunpack.c.l.b16 %v2315
    %v2489 = vunpack.c.h.b16 %v2315
    %v2490 = vunpack.c.l.b16 %v2316
    %v2491 = vunpack.c.h.b16 %v2316
    %v2492 = vunpack.c.l.b16 %v2317
    %v2493 = vunpack.c.h.b16 %v2317
    %v2494 = vunpack.c.l.b16 %v2318
    %v2495 = vunpack.c.h.b16 %v2318
    %v2496 = vunpack.c.l.b16 %v2319
    %v2497 = vunpack.c.h.b16 %v2319
    %v2498 = vunpack.c.l.b16 %v2320
    %v2499 = vunpack.c.h.b16 %v2320
    %v2500 = vunpack.c.l.b16 %v2321
    %v2501 = vunpack.c.h.b16 %v2321
    %v2502 = vunpack.c.l.b16 %v2322
    %v2503 = vunpack.c.h.b16 %v2322
    %v2504 = vunpack.c.l.b16 %v2323
    %v2505 = vunpack.c.h.b16 %v2323
    %v2506 = vunpack.c.l.b16 %v2324
    %v2507 = vunpack.c.h.b16 %v2324
    %v2508 = vunpack.c.l.b16 %v2325
    %v2509 = vunpack.c.h.b16 %v2325
    %v2510 = vunpack.c.l.b16 %v2326
    %v2511 = vunpack.c.h.b16 %v2326
    %v2512 = vunpack.c.l.b16 %v2327
    %v2513 = vunpack.c.h.b16 %v2327
    %v2514 = vunpack.c.l.b16 %v2328
    %v2515 = vunpack.c.h.b16 %v2328
    %v2516 = vunpack.c.l.b16 %v2329
    %v2517 = vunpack.c.h.b16 %v2329
    %v2518 = vunpack.c.l.b16 %v2330
    %v2519 = vunpack.c.h.b16 %v2330
    %v2520 = vunpack.c.l.b16 %v2331
    %v2521 = vunpack.c.h.b16 %v2331
    %v2522 = vunpack.c.l.b16 %v2332
    %v2523 = vunpack.c.h.b16 %v2332
    %v2524 = vunpack.c.l.b16 %v2333
    %v2525 = vunpack.c.h.b16 %v2333
    %v2526 = vunpack.c.l.b16 %v2334
    %v2527 = vunpack.c.h.b16 %v2334
    %v2528 = vunpack.c.l.b16 %v2335
    %v2529 = vunpack.c.h.b16 %v2335
    %v2530 = vunpack.c.l.b16 %v2336
    %v2531 = vunpack.c.h.b16 %v2336
    %v2532 = vunpack.c.l.b16 %v2337
    %v2533 = vunpack.c.h.b16 %v2337
    %v2534 = vunpack.c.l.b16 %v2338
    %v2535 = vunpack.c.h.b16 %v2338
    %v2536 = vunpack.c.l.b16 %v2339
    %v2537 = vunpack.c.h.b16 %v2339
    %v2538 = vunpack.c.l.b16 %v2340
    %v2539 = vunpack.c.h.b16 %v2340
    %v2540 = vunpack.c.l.b16 %v2341
    %v2541 = vunpack.c.h.b16 %v2341
    %v2542 = vunpack.c.l.b16 %v2342
    %v2543 = vunpack.c.h.b16 %v2342
    %v2544 = vunpack.c.l.b16 %v2343
    %v2545 = vunpack.c.h.b16 %v2343
    %v2546 = vunpack.c.l.b16 %v2344
    %v2547 = vunpack.c.h.b16 %v2344
    %v2548 = vunpack.c.l.b16 %v2345
    %v2549 = vunpack.c.h.b16 %v2345
    %v2550 = vpack.c.b16 %v2424, %v2422
    %v2551 = vpack.c.b16 %v2425, %v2423
    %v2552 = vpack.c.b16 %v2428, %v2426
    %v2553 = vpack.c.b16 %v2429, %v2427
    %v2554 = vpack.c.b16 %v2432, %v2430
    %v2555 = vpack.c.b16 %v2433, %v2431
    %v2556 = vpack.c.b16 %v2436, %v2434
    %v2557 = vpack.c.b16 %v2437, %v2435
    %v2558 = vpack.c.b16 %v2440, %v2438
    %v2559 = vpack.c.b16 %v2441, %v2439
    %v2560 = vpack.c.b16 %v2444, %v2442
    %v2561 = vpack.c.b16 %v2445, %v2443
    %v2562 = vpack.c.b16 %v2448, %v2446
    %v2563 = vpack.c.b16 %v2449, %v2447
    %v2564 = vpack.c.b16 %v2452, %v2450
    %v2565 = vpack.c.b16 %v2453, %v2451
    %v2566 = vpack.c.b16 %v2456, %v2454
    %v2567 = vpack.c.b16 %v2457, %v2455
    %v2568 = vpack.c.b16 %v2460, %v2458
    %v2569 = vpack.c.b16 %v2461, %v2459
    %v2570 = vpack.c.b16 %v2464, %v2462
    %v2571 = vpack.c.b16 %v2465, %v2463
    %v2572 = vpack.c.b16 %v2468, %v2466
    %v2573 = vpack.c.b16 %v2469, %v2467
    %v2574 = vpack.c.b16 %v2472, %v2470
    %v2575 = vpack.c.b16 %v2473, %v2471
    %v2576 = vpack.c.b16 %v2476, %v2474
    %v2577 = vpack.c.b16 %v2477, %v2475
    %v2578 = vpack.c.b16 %v2480, %v2478
    %v2579 = vpack.c.b16 %v2481, %v2479
    %v2580 = vpack.c.b16 %v2484, %v2482
    %v2581 = vpack.c.b16 %v2485, %v2483
    %v2582 = vpack.c.b16 %v2488, %v2486
    %v2583 = vpack.c.b16 %v2489, %v2487
    %v2584 = vpack.c.b16 %v2492, %v2490
    %v2585 = vpack.c.b16 %v2493, %v2491
    %v2586 = vpack.c.b16 %v2496, %v2494
    %v2587 = vpack.c.b16 %v2497, %v2495
    %v2588 = vpack.c.b16 %v2500, %v2498
    %v2589 = vpack.c.b16 %v2501, %v2499
    %v2590 = vpack.c.b16 %v2504, %v2502
    %v2591 = vpack.c.b16 %v2505, %v2503
    %v2592 = vpack.c.b16 %v2508, %v2506
    %v2593 = vpack.c.b16 %v2509, %v2507
    %v2594 = vpack.c.b16 %v2512, %v2510
    %v2595 = vpack.c.b16 %v2513, %v2511
    %v2596 = vpack.c.b16 %v2516, %v2514
    %v2597 = vpack.c.b16 %v2517, %v2515
    %v2598 = vpack.c.b16 %v2520, %v2518
    %v2599 = vpack.c.b16 %v2521, %v2519
    %v2600 = vpack.c.b16 %v2524, %v2522
    %v2601 = vpack.c.b16 %v2525, %v2523
    %v2602 = vpack.c.b16 %v2528, %v2526
    %v2603 = vpack.c.b16 %v2529, %v2527
    %v2604 = vpack.c.b16 %v2532, %v2530
    %v2605 = vpack.c.b16 %v2533, %v2531
    %v2606 = vpack.c.b16 %v2536, %v2534
    %v2607 = vpack.c.b16 %v2537, %v2535
    %v2608 = vpack.c.b16 %v2540, %v2538
    %v2609 = vpack.c.b16 %v2541, %v2539
    %v2610 = vpack.c.b16 %v2544, %v2542
    %v2611 = vpack.c.b16 %v2545, %v2543
    %v2612 = vpack.c.b16 %v2548, %v2546
    %v2613 = vpack.c.b16 %v2549, %v2547
    %2678 = vmatprep.subr.bf16.mxu0 %v2551
    %2679 = vmatpush1.bf16.msra.mxu0 %v2550
    %2680 = vmatprep.subr.bf16.mxu0 %v2553
    %2681 = vmatpush1.bf16.msra.mxu0 %v2552
    %2682 = vmatprep.subr.bf16.mxu0 %v2555
    %2683 = vmatpush1.bf16.msra.mxu0 %v2554
    %2684 = vmatprep.subr.bf16.mxu0 %v2557
    %2685 = vmatpush1.bf16.msra.mxu0 %v2556
    %2686 = vmatprep.subr.bf16.mxu0 %v2559
    %2687 = vmatpush1.bf16.msra.mxu0 %v2558
    %2688 = vmatprep.subr.bf16.mxu0 %v2561
    %2689 = vmatpush1.bf16.msra.mxu0 %v2560
    %2690 = vmatprep.subr.bf16.mxu0 %v2563
    %2691 = vmatpush1.bf16.msra.mxu0 %v2562
    %2692 = vmatprep.subr.bf16.mxu0 %v2565
    %2693 = vmatpush1.bf16.msra.mxu0 %v2564
    %2694 = vmatprep.subr.bf16.mxu0 %v2567
    %2695 = vmatpush1.bf16.msra.mxu0 %v2566
    %2696 = vmatprep.subr.bf16.mxu0 %v2569
    %2697 = vmatpush1.bf16.msra.mxu0 %v2568
    %2698 = vmatprep.subr.bf16.mxu0 %v2571
    %2699 = vmatpush1.bf16.msra.mxu0 %v2570
    %2700 = vmatprep.subr.bf16.mxu0 %v2573
    %2701 = vmatpush1.bf16.msra.mxu0 %v2572
    %2702 = vmatprep.subr.bf16.mxu0 %v2575
    %2703 = vmatpush1.bf16.msra.mxu0 %v2574
    %2704 = vmatprep.subr.bf16.mxu0 %v2577
    %2705 = vmatpush1.bf16.msra.mxu0 %v2576
    %2706 = vmatprep.subr.bf16.mxu0 %v2579
    %2707 = vmatpush1.bf16.msra.mxu0 %v2578
    %2708 = vmatprep.subr.bf16.mxu0 %v2581
    %2709 = vmatpush1.bf16.msra.mxu0 %v2580
    %2710 = vmatprep.mubr.bf16.mxu0 %v2279
    %2711 = vmatmul.mubr.bf16.gmra.mrb[0].mxu0 %v2278
    %v2712 = vpop.f32.mrb[0].mxu0
    %v2713 = vadd.f32 %v2351, %v2712
    %v2714 = vpop.f32.mrb[0].mxu0
    %v2715 = vadd.f32 %v2355, %v2714
    %v2716 = vpop.f32.mrb[0].mxu0
    %v2717 = vpop.f32.mrb[0].mxu0
    %2718 = vdwg.mxu0
    %2719 = vmatprep.subr.bf16.mxu0 %v2583
    %2720 = vmatpush1.bf16.msra.mxu0 %v2582
    %2721 = vmatprep.subr.bf16.mxu0 %v2585
    %2722 = vmatpush1.bf16.msra.mxu0 %v2584
    %2723 = vmatprep.subr.bf16.mxu0 %v2587
    %2724 = vmatpush1.bf16.msra.mxu0 %v2586
    %2725 = vmatprep.subr.bf16.mxu0 %v2589
    %2726 = vmatpush1.bf16.msra.mxu0 %v2588
    %2727 = vmatprep.subr.bf16.mxu0 %v2591
    %2728 = vmatpush1.bf16.msra.mxu0 %v2590
    %2729 = vmatprep.subr.bf16.mxu0 %v2593
    %2730 = vmatpush1.bf16.msra.mxu0 %v2592
    %2731 = vmatprep.subr.bf16.mxu0 %v2595
    %2732 = vmatpush1.bf16.msra.mxu0 %v2594
    %2733 = vmatprep.subr.bf16.mxu0 %v2597
    %2734 = vmatpush1.bf16.msra.mxu0 %v2596
    %2735 = vmatprep.subr.bf16.mxu0 %v2599
    %2736 = vmatpush1.bf16.msra.mxu0 %v2598
    %2737 = vmatprep.subr.bf16.mxu0 %v2601
    %2738 = vmatpush1.bf16.msra.mxu0 %v2600
    %2739 = vmatprep.subr.bf16.mxu0 %v2603
    %2740 = vmatpush1.bf16.msra.mxu0 %v2602
    %2741 = vmatprep.subr.bf16.mxu0 %v2605
    %2742 = vmatpush1.bf16.msra.mxu0 %v2604
    %2743 = vmatprep.subr.bf16.mxu0 %v2607
    %2744 = vmatpush1.bf16.msra.mxu0 %v2606
    %2745 = vmatprep.subr.bf16.mxu0 %v2609
    %2746 = vmatpush1.bf16.msra.mxu0 %v2608
    %2747 = vmatprep.subr.bf16.mxu0 %v2611
    %2748 = vmatpush1.bf16.msra.mxu0 %v2610
    %2749 = vmatprep.subr.bf16.mxu0 %v2613
    %2750 = vmatpush1.bf16.msra.mxu0 %v2612
    %2751 = vmatprep.mubr.bf16.mxu0 %v2281
    %2752 = vmatmul.mubr.bf16.gmra.mrb[0].mxu0 %v2280
    %v2753 = vpop.f32.mrb[0].mxu0
    %v2754 = vadd.f32 %v2713, %v2753
    %v2755 = vpop.f32.mrb[0].mxu0
    %v2756 = vadd.f32 %v2715, %v2755
    %v2757 = vpop.f32.mrb[0].mxu0
    %v2758 = vpop.f32.mrb[0].mxu0
    %2759 = vdwg.mxu0
    %vm2760 = vcmp.ge.f32.partialorder %v2754, 0.0
    %vm2761 = vcmp.ge.f32.partialorder %v2756, 0.0
    %v2762 = vmul.f32 %v2754, 0.2
    %v2763 = vmul.f32 %v2756, 0.2
    %v2764 = vsel %vm2760, %v2754, %v2762
    %v2765 = vsel %vm2761, %v2756, %v2763
    %v2766 = vld [vmem:[%s7] sm:$0x3]
    %v2768 = vlaneseq
    %v2769 = vshrl.u32 %v2768, 7
    %v2770 = vsub.s32 0, %v2769
    %v2771 = vrot.slane %v2766, %v2770
    %v2772 = vlaneseq
    %v2773 = vshrl.u32 %v2772, 7
    %v2774 = vsub.s32 1, %v2773
    %v2775 = vrot.slane %v2766, %v2774
    %v2778 = vmul.f32 %v2764, %v2771
    %v2779 = vmul.f32 %v2765, %v2775
    %v2780 = vadd.f32 %v2778, %v2779
    %2781 = vadd.xlane.f32.xlu0 %v2780
    %v2782 = vpop.xlane.xlu0 %2781
    %v2783 = vld [vmem:[#allocation2] sm:$0x1]
    %v2785 = vlaneseq
    %v2786 = vshrl.u32 %v2785, 7
    %v2787 = vsub.s32 0, %v2786
    %v2788 = vrot.slane %v2783, %v2787
    %v2790 = vadd.f32 %v2782, %v2788
    %2792 = vset.pattern.permute.xlu0 0
    %2793 = vperm.xlu0 %2792, %v2790
    %v2794 = vpop.permute.xlu0 %2793
    %v2795 = vlaneseq
    %v2796 = vand.u32 %v2795, 127
    %v2797 = vlaneseq
    %v2798 = vshrl.u32 %v2797, 7
    %v2799 = vsub.s32 %v2796, %v2798
    %v2800 = vrot.slane %v2794, %v2799
    %vm2802 = vcmask 57344
    %2803 = vst.msk [vmem:[#allocation11] sm:$0x1] %vm2802, %v2800
    // Predicated region
    $region54: #{tpu_custom_call.1} parent=1 // pred_check
      _
    $region55: #{tpu_custom_call.1} parent=1 // pred_check_branch
      %2805 = sbr.rel (0) target = $region57
    $region56: #{tpu_custom_call.1} parent=1 // pred_region
      %s2807 = ssub.s32 16, 16
      %2808 = vsyncadd [#allocation5], %s2807
      %s2810 = sshll.u32 [#allocation11], 4
      %s2811 = int_to_ptr.vmem [resolvable:$true] %s2810
      %2813 = dma.vmem_to_hbm [thread:$0]  %s2811, 16, %s9, [#allocation5]
    $region57: #{tpu_custom_call.1} parent=1 // pred_fallthru
      _
    // Predicated region
    $region58: #{tpu_custom_call.1} parent=1 // pred_check
      _
    $region59: #{tpu_custom_call.1} parent=1 // pred_check_branch
      %2815 = sbr.rel (0) target = $region61
    $region60: #{tpu_custom_call.1} parent=1 // pred_region
      %2816 = dma.done [#allocation5], 16
    $region61: #{tpu_custom_call.1} parent=1 // pred_fallthru
      _
    %2817 = vsyncpa [#allocation4], 1
    %2818 = vsyncpa [#allocation7], 1
    %2819 = vsyncpa [#allocation10], 1
    %2820 = vsyncpa [#allocation5], 1

</llo_original>
